<compile_context>
chip_gen: v5e
topology: v5e:2x2
jax: 0.10.0
libtpu: 0.0.40
codegen_flags: <defaults>
</compile_context>

<pallas_src>
import jax
import jax.numpy as jnp
from jax.experimental import pallas as pl
from jax.experimental.pallas import tpu as pltpu

D_IN = 784  # 28 * 28


def _leaky_relu(x, slope=0.2):
    return jnp.where(x > 0, x, slope * x)


def _round_up(n, m):
    return ((n + m - 1) // m) * m


def _choose_tm(batch, tm_max):
    """Rows per grid step."""
    if batch <= 128:
        # Tiny batch: a single tile; round rows to the f32 sublane tile (8).
        return _round_up(batch, 8)
    # Medium/large batch: tile is a multiple of 128 (MXU-friendly on
    # v5e/v6e/v7x) and chosen so there are at least 2 grid steps, so the
    # "parallel" batch axis actually lands on both v7x TensorCores.
    half = _round_up((batch + 1) // 2, 128)
    return min(tm_max, half)


def discriminator_kernel(x_ref, w1_ref, b1_ref, w2_ref, b2_ref, w3_ref, b3_ref, o_ref):
    # x tile: (TM, 784) f32 -> bf16 in VMEM (cast fused into the kernel).
    x = x_ref[...].astype(jnp.bfloat16)

    # Encoder: Linear(784 -> 256) + LeakyReLU(0.2); f32 accumulate, f32 elementwise.
    h1 = jnp.dot(x, w1_ref[...], preferred_element_type=jnp.float32) + b1_ref[...]
    h1 = _leaky_relu(h1)

    # Encoder: Linear(256 -> n_z) + LeakyReLU(0.2)
    h2 = jnp.dot(h1.astype(jnp.bfloat16), w2_ref[...],
                 preferred_element_type=jnp.float32) + b2_ref[...]
    h2 = _leaky_relu(h2)

    # x.squeeze() is a no-op on the (TM, n_z) activation.
    # Decoder: Linear(n_z -> 784); store bf16 to halve output HBM traffic.
    y = jnp.dot(h2.astype(jnp.bfloat16), w3_ref[...],
                preferred_element_type=jnp.float32) + b3_ref[...]
    o_ref[...] = y.astype(o_ref.dtype)


def prepare_params(params):
    """Cast (in, out)-layout f32 weights for the kernel: bf16 weights, f32 biases."""
    w1, b1, w2, b2, w3, b3 = params
    return (w1.astype(jnp.bfloat16), b1.astype(jnp.float32),
            w2.astype(jnp.bfloat16), b2.astype(jnp.float32),
            w3.astype(jnp.bfloat16), b3.astype(jnp.float32))


def discriminator_forward(x, prepared_params, *, tm=512):
    """x: (B, 1, 28, 28) or (B, 784) float32.  Returns (B, 28, 28) bfloat16."""
    w1, b1, w2, b2, w3, b3 = prepared_params
    d_in, h1_dim = w1.shape
    n_z = w2.shape[1]
    d_out = w3.shape[1]
    assert d_in == D_IN and d_out == D_IN, (d_in, d_out)
    # Decoder input width must match the encoder's n_z (the torch module's
    # nn.Linear(256, 784) forces n_z == 256).
    assert w3.shape[0] == n_z, (w3.shape, n_z)

    x_flat = x.reshape(-1, d_in).astype(jnp.float32)  # torch's x.view(-1, 784)
    batch = x_flat.shape[0]

    tm_eff = _choose_tm(batch, tm)
    b_pad = _round_up(batch, tm_eff)
    if b_pad != batch:
        # Row padding only (no lane padding), and only when the batch doesn't
        # divide the tile; padded rows are sliced off below.
        x_flat = jnp.pad(x_flat, ((0, b_pad - batch), (0, 0)))

    grid = (b_pad // tm_eff,)

    out_pad = pl.pallas_call(
        discriminator_kernel,
        out_shape=jax.ShapeDtypeStruct((b_pad, d_out), jnp.bfloat16),
        grid_spec=pltpu.PrefetchScalarGridSpec(
            num_scalar_prefetch=0,
            grid=grid,
            in_specs=[
                # Activations stream over the batch grid (784 == full last dim).
                pl.BlockSpec((tm_eff, d_in), lambda i: (i, 0)),
                # Weights / biases: constant block index -> fetched once and
                # kept resident in VMEM.  Total ~1 MB in bf16, so the default
                # 2-deep buffering overhead is negligible against the 32 MiB
                # limit (single-buffering them is only a v7x micro-opt).
                pl.BlockSpec((d_in, h1_dim), lambda i: (0, 0)),
                pl.BlockSpec((1, h1_dim), lambda i: (0, 0)),
                pl.BlockSpec((h1_dim, n_z), lambda i: (0, 0)),
                pl.BlockSpec((1, n_z), lambda i: (0, 0)),
                pl.BlockSpec((n_z, d_out), lambda i: (0, 0)),
                pl.BlockSpec((1, d_out), lambda i: (0, 0)),
            ],
            out_specs=pl.BlockSpec((tm_eff, d_out), lambda i: (i, 0)),
        ),
        compiler_params=pltpu.CompilerParams(
            dimension_semantics=("parallel",),   # shard the batch across TCs on v7x
            vmem_limit_bytes=32 << 20,
        ),
    )(x_flat, w1, b1, w2, b2, w3, b3)

    out = out_pad if b_pad == batch else out_pad[:batch]
    return out.reshape(-1, 28, 28)


def init_params(key, n_z=256):
    """Deterministic init mimicking torch.nn.Linear default (U[-1/sqrt(in), 1/sqrt(in)]).
    Weights stored as (in, out) — transposed relative to torch's (out, in)."""
    k1, k2, k3, k4, k5, k6 = jax.random.split(key, 6)

    def lin(kw, kb, fan_in, fan_out):
        bound = 1.0 / jnp.sqrt(fan_in)
        w = jax.random.uniform(kw, (fan_in, fan_out), jnp.float32, -bound, bound)
        b = jax.random.uniform(kb, (1, fan_out), jnp.float32, -bound, bound)
        return w, b

    w1, b1 = lin(k1, k2, D_IN, 256)    # encoder.first
    w2, b2 = lin(k3, k4, 256, n_z)     # encoder.second
    w3, b3 = lin(k5, k6, n_z, D_IN)    # decoder (torch: Linear(256, 784) -> n_z must be 256)
    return (w1, b1, w2, b2, w3, b3)


def reference_forward(x, params):
    """Pure-JAX reference using the same bf16-operand / f32-accumulate matmuls."""
    w1, b1, w2, b2, w3, b3 = params
    xf = x.reshape(-1, D_IN).astype(jnp.float32)
    h1 = _leaky_relu(jnp.dot(xf.astype(jnp.bfloat16), w1.astype(jnp.bfloat16),
                             preferred_element_type=jnp.float32) + b1)
    h2 = _leaky_relu(jnp.dot(h1.astype(jnp.bfloat16), w2.astype(jnp.bfloat16),
                             preferred_element_type=jnp.float32) + b2)
    y = jnp.dot(h2.astype(jnp.bfloat16), w3.astype(jnp.bfloat16),
                preferred_element_type=jnp.float32) + b3
    return y.reshape(-1, 28, 28)


if __name__ == "__main__":
    key = jax.random.PRNGKey(0)
    k_params, k_x1, k_x2 = jax.random.split(key, 3)

    # args: n_channel=1, dim_h=64, n_z=256 (decoder Linear(256, 784) fixes n_z == 256)
    params = init_params(k_params, n_z=256)
    prepared = prepare_params(params)

    # Case 1: small NCHW image batch (exercises row-padded single tile).
    B1 = 10
    x1 = jax.random.normal(k_x1, (B1, 1, 28, 28), jnp.float32)
    out1 = jax.block_until_ready(discriminator_forward(x1, prepared))
    ref1 = reference_forward(x1, params)
    assert out1.shape == (B1, 28, 28), out1.shape
    assert jnp.allclose(out1.astype(jnp.float32), ref1, atol=2e-2, rtol=2e-2), \
        "mismatch vs JAX reference (small batch)"

    # Case 2: flat input, 2 grid steps (both v7x TensorCores get a tile).
    B2 = 256
    x2 = jax.random.normal(k_x2, (B2, D_IN), jnp.float32)
    out2 = jax.block_until_ready(discriminator_forward(x2, prepared))
    ref2 = reference_forward(x2, params)
    assert out2.shape == (B2, 28, 28), out2.shape
    assert jnp.allclose(out2.astype(jnp.float32), ref2, atol=2e-2, rtol=2e-2), \
        "mismatch vs JAX reference (multi-tile batch)"

    print("KERNEL_OK")
</pallas_src>

<mosaic_0001>
module attributes {stable_mosaic.version = 11 : i64} {
  func.func @discriminator_kernel(%arg0: i32, %arg1: memref<16x784xf32, #tpu.memory_space<vmem>>, %arg2: memref<784x256xbf16, #tpu.memory_space<vmem>>, %arg3: memref<1x256xf32, #tpu.memory_space<vmem>>, %arg4: memref<256x256xbf16, #tpu.memory_space<vmem>>, %arg5: memref<1x256xf32, #tpu.memory_space<vmem>>, %arg6: memref<256x784xbf16, #tpu.memory_space<vmem>>, %arg7: memref<1x784xf32, #tpu.memory_space<vmem>>, %arg8: memref<16x784xbf16, #tpu.memory_space<vmem>>) attributes {dimension_semantics = [#tpu.dimension_semantics<parallel>], iteration_bounds = array<i64: 1>, scalar_prefetch = 0 : i64, scratch_operands = 0 : i64, tpu.core_type = #tpu.core_type<tc>, window_params = [{transform_indices = @transform_0, window_bounds = array<i64: 16, 784>}, {pipeline_mode = #tpu.pipeline_mode<synchronous>, transform_indices = @transform_1, window_bounds = array<i64: 784, 256>}, {pipeline_mode = #tpu.pipeline_mode<synchronous>, transform_indices = @transform_2, window_bounds = array<i64: 1, 256>}, {pipeline_mode = #tpu.pipeline_mode<synchronous>, transform_indices = @transform_3, window_bounds = array<i64: 256, 256>}, {pipeline_mode = #tpu.pipeline_mode<synchronous>, transform_indices = @transform_4, window_bounds = array<i64: 1, 256>}, {pipeline_mode = #tpu.pipeline_mode<synchronous>, transform_indices = @transform_5, window_bounds = array<i64: 256, 784>}, {pipeline_mode = #tpu.pipeline_mode<synchronous>, transform_indices = @transform_6, window_bounds = array<i64: 1, 784>}, {transform_indices = @transform_7, window_bounds = array<i64: 16, 784>}]} {
    %c0 = arith.constant 0 : index
    %c0_0 = arith.constant 0 : index
    %0 = vector.load %arg1[%c0, %c0_0] : memref<16x784xf32, #tpu.memory_space<vmem>>, vector<16x784xf32>
    %1 = arith.truncf %0 : vector<16x784xf32> to vector<16x784xbf16>
    %c0_1 = arith.constant 0 : index
    %c0_2 = arith.constant 0 : index
    %2 = vector.load %arg2[%c0_1, %c0_2] : memref<784x256xbf16, #tpu.memory_space<vmem>>, vector<784x256xbf16>
    %cst = arith.constant dense<0.000000e+00> : vector<16x256xf32>
    %3 = tpu.matmul %1, %2, %cst {dimension_numbers = #tpu.dot_dimension_numbers<[1], [0], [0], [1], [0, 0, 1, 1], [], []>} : vector<16x784xbf16>, vector<784x256xbf16>, vector<16x256xf32> -> vector<16x256xf32>
    %c0_3 = arith.constant 0 : index
    %c0_4 = arith.constant 0 : index
    %4 = vector.load %arg3[%c0_3, %c0_4] : memref<1x256xf32, #tpu.memory_space<vmem>>, vector<1x256xf32>
    %5 = vector.broadcast %4 : vector<1x256xf32> to vector<16x256xf32>
    %6 = arith.addf %3, %5 : vector<16x256xf32>
    %cst_5 = arith.constant 0.000000e+00 : f32
    %7 = vector.broadcast %cst_5 : f32 to vector<16x256xf32>
    %8 = arith.cmpf ogt, %6, %7 : vector<16x256xf32>
    %cst_6 = arith.constant 2.000000e-01 : f32
    %9 = vector.broadcast %cst_6 : f32 to vector<16x256xf32>
    %10 = arith.mulf %9, %6 : vector<16x256xf32>
    %11 = arith.select %8, %6, %10 : vector<16x256xi1>, vector<16x256xf32>
    %12 = arith.truncf %11 : vector<16x256xf32> to vector<16x256xbf16>
    %c0_7 = arith.constant 0 : index
    %c0_8 = arith.constant 0 : index
    %13 = vector.load %arg4[%c0_7, %c0_8] : memref<256x256xbf16, #tpu.memory_space<vmem>>, vector<256x256xbf16>
    %cst_9 = arith.constant dense<0.000000e+00> : vector<16x256xf32>
    %14 = tpu.matmul %12, %13, %cst_9 {dimension_numbers = #tpu.dot_dimension_numbers<[1], [0], [0], [1], [0, 0, 1, 1], [], []>} : vector<16x256xbf16>, vector<256x256xbf16>, vector<16x256xf32> -> vector<16x256xf32>
    %c0_10 = arith.constant 0 : index
    %c0_11 = arith.constant 0 : index
    %15 = vector.load %arg5[%c0_10, %c0_11] : memref<1x256xf32, #tpu.memory_space<vmem>>, vector<1x256xf32>
    %16 = vector.broadcast %15 : vector<1x256xf32> to vector<16x256xf32>
    %17 = arith.addf %14, %16 : vector<16x256xf32>
    %cst_12 = arith.constant 0.000000e+00 : f32
    %18 = vector.broadcast %cst_12 : f32 to vector<16x256xf32>
    %19 = arith.cmpf ogt, %17, %18 : vector<16x256xf32>
    %cst_13 = arith.constant 2.000000e-01 : f32
    %20 = vector.broadcast %cst_13 : f32 to vector<16x256xf32>
    %21 = arith.mulf %20, %17 : vector<16x256xf32>
    %22 = arith.select %19, %17, %21 : vector<16x256xi1>, vector<16x256xf32>
    %23 = arith.truncf %22 : vector<16x256xf32> to vector<16x256xbf16>
    %c0_14 = arith.constant 0 : index
    %c0_15 = arith.constant 0 : index
    %24 = vector.load %arg6[%c0_14, %c0_15] : memref<256x784xbf16, #tpu.memory_space<vmem>>, vector<256x784xbf16>
    %cst_16 = arith.constant dense<0.000000e+00> : vector<16x784xf32>
    %25 = tpu.matmul %23, %24, %cst_16 {dimension_numbers = #tpu.dot_dimension_numbers<[1], [0], [0], [1], [0, 0, 1, 1], [], []>} : vector<16x256xbf16>, vector<256x784xbf16>, vector<16x784xf32> -> vector<16x784xf32>
    %c0_17 = arith.constant 0 : index
    %c0_18 = arith.constant 0 : index
    %26 = vector.load %arg7[%c0_17, %c0_18] : memref<1x784xf32, #tpu.memory_space<vmem>>, vector<1x784xf32>
    %27 = vector.broadcast %26 : vector<1x784xf32> to vector<16x784xf32>
    %28 = arith.addf %25, %27 : vector<16x784xf32>
    %29 = arith.truncf %28 : vector<16x784xf32> to vector<16x784xbf16>
    %c0_19 = arith.constant 0 : index
    %c0_20 = arith.constant 0 : index
    %30 = vector.load %arg8[%c0_19, %c0_20] : memref<16x784xbf16, #tpu.memory_space<vmem>>, vector<16x784xbf16>
    tpu.vector_store %arg8[%c0_19, %c0_20], %29 {strides = array<i32>} : memref<16x784xbf16, #tpu.memory_space<vmem>>, vector<16x784xbf16>,
    return
  }
  func.func @transform_0(%arg0: i32) -> (i32, i32) {
    %c0_i32 = arith.constant 0 : i32
    %c0_i32_0 = arith.constant 0 : i32
    return %arg0, %c0_i32 : i32, i32
  }
  func.func @transform_1(%arg0: i32) -> (i32, i32) {
    %c0_i32 = arith.constant 0 : i32
    %c0_i32_0 = arith.constant 0 : i32
    %c0_i32_1 = arith.constant 0 : i32
    return %c0_i32, %c0_i32_0 : i32, i32
  }
  func.func @transform_2(%arg0: i32) -> (i32, i32) {
    %c0_i32 = arith.constant 0 : i32
    %c0_i32_0 = arith.constant 0 : i32
    %c0_i32_1 = arith.constant 0 : i32
    return %c0_i32, %c0_i32_0 : i32, i32
  }
  func.func @transform_3(%arg0: i32) -> (i32, i32) {
    %c0_i32 = arith.constant 0 : i32
    %c0_i32_0 = arith.constant 0 : i32
    %c0_i32_1 = arith.constant 0 : i32
    return %c0_i32, %c0_i32_0 : i32, i32
  }
  func.func @transform_4(%arg0: i32) -> (i32, i32) {
    %c0_i32 = arith.constant 0 : i32
    %c0_i32_0 = arith.constant 0 : i32
    %c0_i32_1 = arith.constant 0 : i32
    return %c0_i32, %c0_i32_0 : i32, i32
  }
  func.func @transform_5(%arg0: i32) -> (i32, i32) {
    %c0_i32 = arith.constant 0 : i32
    %c0_i32_0 = arith.constant 0 : i32
    %c0_i32_1 = arith.constant 0 : i32
    return %c0_i32, %c0_i32_0 : i32, i32
  }
  func.func @transform_6(%arg0: i32) -> (i32, i32) {
    %c0_i32 = arith.constant 0 : i32
    %c0_i32_0 = arith.constant 0 : i32
    %c0_i32_1 = arith.constant 0 : i32
    return %c0_i32, %c0_i32_0 : i32, i32
  }
  func.func @transform_7(%arg0: i32) -> (i32, i32) {
    %c0_i32 = arith.constant 0 : i32
    %c0_i32_0 = arith.constant 0 : i32
    return %arg0, %c0_i32 : i32, i32
  }
}

</mosaic_0001>

<llo_original>
// kernel: tpu_custom_call.1
$region0: #{tpu_custom_call.1}
  #allocation0 [shape = 'u32[]', space=smem, size = 0x4, offset = 0x4, fixed_abs, tag = 'smem constant byte address 0x4 - core index']
  #allocation1 [shape = 'u32[72,128]{1,0:T(1,128)}', space=vmem, size = 0x9000, scoped, tag = 'internal scratch']
  %s0 = inlined_call_operand.vmem [shape: f32[16,784], index: 0, kind: input, shape index: {}]
  %s1 = inlined_call_operand.vmem [shape: bf16[784,256], index: 1, kind: input, shape index: {}]
  %s2 = inlined_call_operand.vmem [shape: f32[1,256], index: 2, kind: input, shape index: {}]
  %s3 = inlined_call_operand.vmem [shape: bf16[256,256], index: 3, kind: input, shape index: {}]
  %s4 = inlined_call_operand.vmem [shape: f32[1,256], index: 4, kind: input, shape index: {}]
  %s5 = inlined_call_operand.vmem [shape: bf16[256,784], index: 5, kind: input, shape index: {}]
  %s6 = inlined_call_operand.vmem [shape: f32[1,784], index: 6, kind: input, shape index: {}]
  %s7 = inlined_call_operand.hbm [shape: bf16[16,784], index: 7, kind: output, shape index: {}]
  %s8 = sld [smem:[#allocation0]]
  $region38: #{tpu_custom_call.1} parent=0
    _
  %s10 = ssub.s32 1, %s8
  %s11 = scalar_select 0, %s10, %s8
  $region1: #{tpu_custom_call.1} parent=0
    #allocation2 [shape = 'u8[28672]{0}', space=vmem, size = 0x7000, scoped, tag = 'output window, operand 0, single buffered']
    #allocation3 [shape = 's32[1]{0}', space=sflag, size = 0x4, scoped, tag = 'scoped memory for tpu_custom_call.1']
    %12 = vsyncpa [#allocation3], 0
    // Predicated region
    $region2: #{tpu_custom_call.1} parent=1 // pred_check
      _
    $region3: #{tpu_custom_call.1} parent=1 // pred_check_branch
      %14 = sbr.rel (0) target = $region5
    $region4: #{tpu_custom_call.1} parent=1 // pred_region
      _
    $region5: #{tpu_custom_call.1} parent=1 // pred_fallthru
      _
    // Predicated region
    $region6: #{tpu_custom_call.1} parent=1 // pred_check
      _
    $region7: #{tpu_custom_call.1} parent=1 // pred_check_branch
      %16 = sbr.rel (0) target = $region9
    $region8: #{tpu_custom_call.1} parent=1 // pred_region
      _
    $region9: #{tpu_custom_call.1} parent=1 // pred_fallthru
      _
    // Predicated region
    $region10: #{tpu_custom_call.1} parent=1 // pred_check
      _
    $region11: #{tpu_custom_call.1} parent=1 // pred_check_branch
      %18 = sbr.rel (0) target = $region13
    $region12: #{tpu_custom_call.1} parent=1 // pred_region
      _
    $region13: #{tpu_custom_call.1} parent=1 // pred_fallthru
      _
    // Predicated region
    $region14: #{tpu_custom_call.1} parent=1 // pred_check
      _
    $region15: #{tpu_custom_call.1} parent=1 // pred_check_branch
      %20 = sbr.rel (0) target = $region17
    $region16: #{tpu_custom_call.1} parent=1 // pred_region
      _
    $region17: #{tpu_custom_call.1} parent=1 // pred_fallthru
      _
    // Predicated region
    $region18: #{tpu_custom_call.1} parent=1 // pred_check
      _
    $region19: #{tpu_custom_call.1} parent=1 // pred_check_branch
      %22 = sbr.rel (0) target = $region21
    $region20: #{tpu_custom_call.1} parent=1 // pred_region
      _
    $region21: #{tpu_custom_call.1} parent=1 // pred_fallthru
      _
    // Predicated region
    $region22: #{tpu_custom_call.1} parent=1 // pred_check
      _
    $region23: #{tpu_custom_call.1} parent=1 // pred_check_branch
      %24 = sbr.rel (0) target = $region25
    $region24: #{tpu_custom_call.1} parent=1 // pred_region
      _
    $region25: #{tpu_custom_call.1} parent=1 // pred_fallthru
      _
    // Predicated region
    $region26: #{tpu_custom_call.1} parent=1 // pred_check
      _
    $region27: #{tpu_custom_call.1} parent=1 // pred_check_branch
      %26 = sbr.rel (0) target = $region29
    $region28: #{tpu_custom_call.1} parent=1 // pred_region
      _
    $region29: #{tpu_custom_call.1} parent=1 // pred_fallthru
      _
    %v28 = vld [vmem:[%s0] sm:$0xff]
    %v29 = vld [vmem:[%s0 + $0x8] sm:$0xff]
    %v30 = vld [vmem:[%s0 + $0x10] sm:$0xff]
    %v31 = vld [vmem:[%s0 + $0x18] sm:$0xff]
    %v32 = vld [vmem:[%s0 + $0x20] sm:$0xff]
    %v33 = vld [vmem:[%s0 + $0x28] sm:$0xff]
    %v34 = vld [vmem:[%s0 + $0x30] sm:$0xff]
    %v35 = vld [vmem:[%s0 + $0x38] sm:$0xff]
    %v36 = vld [vmem:[%s0 + $0x40] sm:$0xff]
    %v37 = vld [vmem:[%s0 + $0x48] sm:$0xff]
    %v38 = vld [vmem:[%s0 + $0x50] sm:$0xff]
    %v39 = vld [vmem:[%s0 + $0x58] sm:$0xff]
    %v40 = vld [vmem:[%s0 + $0x60] sm:$0xff]
    %v41 = vld [vmem:[%s0 + $0x68] sm:$0xff]
    %v42 = vpack.c.bf16 %v35, %v28
    %v43 = vpack.c.bf16 %v36, %v29
    %v44 = vpack.c.bf16 %v37, %v30
    %v45 = vpack.c.bf16 %v38, %v31
    %v46 = vpack.c.bf16 %v39, %v32
    %v47 = vpack.c.bf16 %v40, %v33
    %v48 = vpack.c.bf16 %v41, %v34
    %v49 = vld [vmem:[%s1] sm:$0xff]
    %v50 = vld [vmem:[%s1 + $0x8] sm:$0xff]
    %v51 = vld [vmem:[%s1 + $0x10] sm:$0xff]
    %v52 = vld [vmem:[%s1 + $0x18] sm:$0xff]
    %v53 = vld [vmem:[%s1 + $0x20] sm:$0xff]
    %v54 = vld [vmem:[%s1 + $0x28] sm:$0xff]
    %v55 = vld [vmem:[%s1 + $0x30] sm:$0xff]
    %v56 = vld [vmem:[%s1 + $0x38] sm:$0xff]
    %v57 = vld [vmem:[%s1 + $0x40] sm:$0xff]
    %v58 = vld [vmem:[%s1 + $0x48] sm:$0xff]
    %v59 = vld [vmem:[%s1 + $0x50] sm:$0xff]
    %v60 = vld [vmem:[%s1 + $0x58] sm:$0xff]
    %v61 = vld [vmem:[%s1 + $0x60] sm:$0xff]
    %v62 = vld [vmem:[%s1 + $0x68] sm:$0xff]
    %v63 = vld [vmem:[%s1 + $0x70] sm:$0xff]
    %v64 = vld [vmem:[%s1 + $0x78] sm:$0xff]
    %v65 = vld [vmem:[%s1 + $0x80] sm:$0xff]
    %v66 = vld [vmem:[%s1 + $0x88] sm:$0xff]
    %v67 = vld [vmem:[%s1 + $0x90] sm:$0xff]
    %v68 = vld [vmem:[%s1 + $0x98] sm:$0xff]
    %v69 = vld [vmem:[%s1 + $0xa0] sm:$0xff]
    %v70 = vld [vmem:[%s1 + $0xa8] sm:$0xff]
    %v71 = vld [vmem:[%s1 + $0xb0] sm:$0xff]
    %v72 = vld [vmem:[%s1 + $0xb8] sm:$0xff]
    %v73 = vld [vmem:[%s1 + $0xc0] sm:$0xff]
    %v74 = vld [vmem:[%s1 + $0xc8] sm:$0xff]
    %v75 = vld [vmem:[%s1 + $0xd0] sm:$0xff]
    %v76 = vld [vmem:[%s1 + $0xd8] sm:$0xff]
    %v77 = vld [vmem:[%s1 + $0xe0] sm:$0xff]
    %v78 = vld [vmem:[%s1 + $0xe8] sm:$0xff]
    %v79 = vld [vmem:[%s1 + $0xf0] sm:$0xff]
    %v80 = vld [vmem:[%s1 + $0xf8] sm:$0xff]
    %v81 = vld [vmem:[%s1 + $0x100] sm:$0xff]
    %v82 = vld [vmem:[%s1 + $0x108] sm:$0xff]
    %v83 = vld [vmem:[%s1 + $0x110] sm:$0xff]
    %v84 = vld [vmem:[%s1 + $0x118] sm:$0xff]
    %v85 = vld [vmem:[%s1 + $0x120] sm:$0xff]
    %v86 = vld [vmem:[%s1 + $0x128] sm:$0xff]
    %v87 = vld [vmem:[%s1 + $0x130] sm:$0xff]
    %v88 = vld [vmem:[%s1 + $0x138] sm:$0xff]
    %v89 = vld [vmem:[%s1 + $0x140] sm:$0xff]
    %v90 = vld [vmem:[%s1 + $0x148] sm:$0xff]
    %v91 = vld [vmem:[%s1 + $0x150] sm:$0xff]
    %v92 = vld [vmem:[%s1 + $0x158] sm:$0xff]
    %v93 = vld [vmem:[%s1 + $0x160] sm:$0xff]
    %v94 = vld [vmem:[%s1 + $0x168] sm:$0xff]
    %v95 = vld [vmem:[%s1 + $0x170] sm:$0xff]
    %v96 = vld [vmem:[%s1 + $0x178] sm:$0xff]
    %v97 = vld [vmem:[%s1 + $0x180] sm:$0xff]
    %v98 = vld [vmem:[%s1 + $0x188] sm:$0xff]
    %v99 = vld [vmem:[%s1 + $0x190] sm:$0xff]
    %v100 = vld [vmem:[%s1 + $0x198] sm:$0xff]
    %v101 = vld [vmem:[%s1 + $0x1a0] sm:$0xff]
    %v102 = vld [vmem:[%s1 + $0x1a8] sm:$0xff]
    %v103 = vld [vmem:[%s1 + $0x1b0] sm:$0xff]
    %v104 = vld [vmem:[%s1 + $0x1b8] sm:$0xff]
    %v105 = vld [vmem:[%s1 + $0x1c0] sm:$0xff]
    %v106 = vld [vmem:[%s1 + $0x1c8] sm:$0xff]
    %v107 = vld [vmem:[%s1 + $0x1d0] sm:$0xff]
    %v108 = vld [vmem:[%s1 + $0x1d8] sm:$0xff]
    %v109 = vld [vmem:[%s1 + $0x1e0] sm:$0xff]
    %v110 = vld [vmem:[%s1 + $0x1e8] sm:$0xff]
    %v111 = vld [vmem:[%s1 + $0x1f0] sm:$0xff]
    %v112 = vld [vmem:[%s1 + $0x1f8] sm:$0xff]
    %v113 = vld [vmem:[%s1 + $0x200] sm:$0xff]
    %v114 = vld [vmem:[%s1 + $0x208] sm:$0xff]
    %v115 = vld [vmem:[%s1 + $0x210] sm:$0xff]
    %v116 = vld [vmem:[%s1 + $0x218] sm:$0xff]
    %v117 = vld [vmem:[%s1 + $0x220] sm:$0xff]
    %v118 = vld [vmem:[%s1 + $0x228] sm:$0xff]
    %v119 = vld [vmem:[%s1 + $0x230] sm:$0xff]
    %v120 = vld [vmem:[%s1 + $0x238] sm:$0xff]
    %v121 = vld [vmem:[%s1 + $0x240] sm:$0xff]
    %v122 = vld [vmem:[%s1 + $0x248] sm:$0xff]
    %v123 = vld [vmem:[%s1 + $0x250] sm:$0xff]
    %v124 = vld [vmem:[%s1 + $0x258] sm:$0xff]
    %v125 = vld [vmem:[%s1 + $0x260] sm:$0xff]
    %v126 = vld [vmem:[%s1 + $0x268] sm:$0xff]
    %v127 = vld [vmem:[%s1 + $0x270] sm:$0xff]
    %v128 = vld [vmem:[%s1 + $0x278] sm:$0xff]
    %v129 = vld [vmem:[%s1 + $0x280] sm:$0xff]
    %v130 = vld [vmem:[%s1 + $0x288] sm:$0xff]
    %v131 = vld [vmem:[%s1 + $0x290] sm:$0xff]
    %v132 = vld [vmem:[%s1 + $0x298] sm:$0xff]
    %v133 = vld [vmem:[%s1 + $0x2a0] sm:$0xff]
    %v134 = vld [vmem:[%s1 + $0x2a8] sm:$0xff]
    %v135 = vld [vmem:[%s1 + $0x2b0] sm:$0xff]
    %v136 = vld [vmem:[%s1 + $0x2b8] sm:$0xff]
    %v137 = vld [vmem:[%s1 + $0x2c0] sm:$0xff]
    %v138 = vld [vmem:[%s1 + $0x2c8] sm:$0xff]
    %v139 = vld [vmem:[%s1 + $0x2d0] sm:$0xff]
    %v140 = vld [vmem:[%s1 + $0x2d8] sm:$0xff]
    %v141 = vld [vmem:[%s1 + $0x2e0] sm:$0xff]
    %v142 = vld [vmem:[%s1 + $0x2e8] sm:$0xff]
    %v143 = vld [vmem:[%s1 + $0x2f0] sm:$0xff]
    %v144 = vld [vmem:[%s1 + $0x2f8] sm:$0xff]
    %v145 = vld [vmem:[%s1 + $0x300] sm:$0xff]
    %v146 = vld [vmem:[%s1 + $0x308] sm:$0xff]
    %v147 = vld [vmem:[%s2] sm:$0x3]
    %v149 = vperm.slane %v147, 0
    %v150 = vperm.slane %v147, 1
    %v251 = vunpack.c.l.b16 %v49
    %v252 = vunpack.c.h.b16 %v49
    %v253 = vunpack.c.l.b16 %v50
    %v254 = vunpack.c.h.b16 %v50
    %v255 = vunpack.c.l.b16 %v51
    %v256 = vunpack.c.h.b16 %v51
    %v257 = vunpack.c.l.b16 %v52
    %v258 = vunpack.c.h.b16 %v52
    %v259 = vunpack.c.l.b16 %v53
    %v260 = vunpack.c.h.b16 %v53
    %v261 = vunpack.c.l.b16 %v54
    %v262 = vunpack.c.h.b16 %v54
    %v263 = vunpack.c.l.b16 %v55
    %v264 = vunpack.c.h.b16 %v55
    %v265 = vunpack.c.l.b16 %v56
    %v266 = vunpack.c.h.b16 %v56
    %v267 = vunpack.c.l.b16 %v57
    %v268 = vunpack.c.h.b16 %v57
    %v269 = vunpack.c.l.b16 %v58
    %v270 = vunpack.c.h.b16 %v58
    %v271 = vunpack.c.l.b16 %v59
    %v272 = vunpack.c.h.b16 %v59
    %v273 = vunpack.c.l.b16 %v60
    %v274 = vunpack.c.h.b16 %v60
    %v275 = vunpack.c.l.b16 %v61
    %v276 = vunpack.c.h.b16 %v61
    %v277 = vunpack.c.l.b16 %v62
    %v278 = vunpack.c.h.b16 %v62
    %v279 = vunpack.c.l.b16 %v63
    %v280 = vunpack.c.h.b16 %v63
    %v281 = vunpack.c.l.b16 %v64
    %v282 = vunpack.c.h.b16 %v64
    %v283 = vunpack.c.l.b16 %v65
    %v284 = vunpack.c.h.b16 %v65
    %v285 = vunpack.c.l.b16 %v66
    %v286 = vunpack.c.h.b16 %v66
    %v287 = vunpack.c.l.b16 %v67
    %v288 = vunpack.c.h.b16 %v67
    %v289 = vunpack.c.l.b16 %v68
    %v290 = vunpack.c.h.b16 %v68
    %v291 = vunpack.c.l.b16 %v69
    %v292 = vunpack.c.h.b16 %v69
    %v293 = vunpack.c.l.b16 %v70
    %v294 = vunpack.c.h.b16 %v70
    %v295 = vunpack.c.l.b16 %v71
    %v296 = vunpack.c.h.b16 %v71
    %v297 = vunpack.c.l.b16 %v72
    %v298 = vunpack.c.h.b16 %v72
    %v299 = vunpack.c.l.b16 %v73
    %v300 = vunpack.c.h.b16 %v73
    %v301 = vunpack.c.l.b16 %v74
    %v302 = vunpack.c.h.b16 %v74
    %v303 = vunpack.c.l.b16 %v75
    %v304 = vunpack.c.h.b16 %v75
    %v305 = vunpack.c.l.b16 %v76
    %v306 = vunpack.c.h.b16 %v76
    %v307 = vunpack.c.l.b16 %v77
    %v308 = vunpack.c.h.b16 %v77
    %v309 = vunpack.c.l.b16 %v78
    %v310 = vunpack.c.h.b16 %v78
    %v311 = vunpack.c.l.b16 %v79
    %v312 = vunpack.c.h.b16 %v79
    %v313 = vunpack.c.l.b16 %v80
    %v314 = vunpack.c.h.b16 %v80
    %v315 = vunpack.c.l.b16 %v81
    %v316 = vunpack.c.h.b16 %v81
    %v317 = vunpack.c.l.b16 %v82
    %v318 = vunpack.c.h.b16 %v82
    %v319 = vunpack.c.l.b16 %v83
    %v320 = vunpack.c.h.b16 %v83
    %v321 = vunpack.c.l.b16 %v84
    %v322 = vunpack.c.h.b16 %v84
    %v323 = vunpack.c.l.b16 %v85
    %v324 = vunpack.c.h.b16 %v85
    %v325 = vunpack.c.l.b16 %v86
    %v326 = vunpack.c.h.b16 %v86
    %v327 = vunpack.c.l.b16 %v87
    %v328 = vunpack.c.h.b16 %v87
    %v329 = vunpack.c.l.b16 %v88
    %v330 = vunpack.c.h.b16 %v88
    %v331 = vunpack.c.l.b16 %v89
    %v332 = vunpack.c.h.b16 %v89
    %v333 = vunpack.c.l.b16 %v90
    %v334 = vunpack.c.h.b16 %v90
    %v335 = vunpack.c.l.b16 %v91
    %v336 = vunpack.c.h.b16 %v91
    %v337 = vunpack.c.l.b16 %v92
    %v338 = vunpack.c.h.b16 %v92
    %v339 = vunpack.c.l.b16 %v93
    %v340 = vunpack.c.h.b16 %v93
    %v341 = vunpack.c.l.b16 %v94
    %v342 = vunpack.c.h.b16 %v94
    %v343 = vunpack.c.l.b16 %v95
    %v344 = vunpack.c.h.b16 %v95
    %v345 = vunpack.c.l.b16 %v96
    %v346 = vunpack.c.h.b16 %v96
    %v347 = vunpack.c.l.b16 %v97
    %v348 = vunpack.c.h.b16 %v97
    %v349 = vunpack.c.l.b16 %v98
    %v350 = vunpack.c.h.b16 %v98
    %v351 = vunpack.c.l.b16 %v99
    %v352 = vunpack.c.h.b16 %v99
    %v353 = vunpack.c.l.b16 %v100
    %v354 = vunpack.c.h.b16 %v100
    %v355 = vunpack.c.l.b16 %v101
    %v356 = vunpack.c.h.b16 %v101
    %v357 = vunpack.c.l.b16 %v102
    %v358 = vunpack.c.h.b16 %v102
    %v359 = vunpack.c.l.b16 %v103
    %v360 = vunpack.c.h.b16 %v103
    %v361 = vunpack.c.l.b16 %v104
    %v362 = vunpack.c.h.b16 %v104
    %v363 = vunpack.c.l.b16 %v105
    %v364 = vunpack.c.h.b16 %v105
    %v365 = vunpack.c.l.b16 %v106
    %v366 = vunpack.c.h.b16 %v106
    %v367 = vunpack.c.l.b16 %v107
    %v368 = vunpack.c.h.b16 %v107
    %v369 = vunpack.c.l.b16 %v108
    %v370 = vunpack.c.h.b16 %v108
    %v371 = vunpack.c.l.b16 %v109
    %v372 = vunpack.c.h.b16 %v109
    %v373 = vunpack.c.l.b16 %v110
    %v374 = vunpack.c.h.b16 %v110
    %v375 = vunpack.c.l.b16 %v111
    %v376 = vunpack.c.h.b16 %v111
    %v377 = vunpack.c.l.b16 %v112
    %v378 = vunpack.c.h.b16 %v112
    %v379 = vunpack.c.l.b16 %v113
    %v380 = vunpack.c.h.b16 %v113
    %v381 = vunpack.c.l.b16 %v114
    %v382 = vunpack.c.h.b16 %v114
    %v383 = vunpack.c.l.b16 %v115
    %v384 = vunpack.c.h.b16 %v115
    %v385 = vunpack.c.l.b16 %v116
    %v386 = vunpack.c.h.b16 %v116
    %v387 = vunpack.c.l.b16 %v117
    %v388 = vunpack.c.h.b16 %v117
    %v389 = vunpack.c.l.b16 %v118
    %v390 = vunpack.c.h.b16 %v118
    %v391 = vunpack.c.l.b16 %v119
    %v392 = vunpack.c.h.b16 %v119
    %v393 = vunpack.c.l.b16 %v120
    %v394 = vunpack.c.h.b16 %v120
    %v395 = vunpack.c.l.b16 %v121
    %v396 = vunpack.c.h.b16 %v121
    %v397 = vunpack.c.l.b16 %v122
    %v398 = vunpack.c.h.b16 %v122
    %v399 = vunpack.c.l.b16 %v123
    %v400 = vunpack.c.h.b16 %v123
    %v401 = vunpack.c.l.b16 %v124
    %v402 = vunpack.c.h.b16 %v124
    %v403 = vunpack.c.l.b16 %v125
    %v404 = vunpack.c.h.b16 %v125
    %v405 = vunpack.c.l.b16 %v126
    %v406 = vunpack.c.h.b16 %v126
    %v407 = vunpack.c.l.b16 %v127
    %v408 = vunpack.c.h.b16 %v127
    %v409 = vunpack.c.l.b16 %v128
    %v410 = vunpack.c.h.b16 %v128
    %v411 = vunpack.c.l.b16 %v129
    %v412 = vunpack.c.h.b16 %v129
    %v413 = vunpack.c.l.b16 %v130
    %v414 = vunpack.c.h.b16 %v130
    %v415 = vunpack.c.l.b16 %v131
    %v416 = vunpack.c.h.b16 %v131
    %v417 = vunpack.c.l.b16 %v132
    %v418 = vunpack.c.h.b16 %v132
    %v419 = vunpack.c.l.b16 %v133
    %v420 = vunpack.c.h.b16 %v133
    %v421 = vunpack.c.l.b16 %v134
    %v422 = vunpack.c.h.b16 %v134
    %v423 = vunpack.c.l.b16 %v135
    %v424 = vunpack.c.h.b16 %v135
    %v425 = vunpack.c.l.b16 %v136
    %v426 = vunpack.c.h.b16 %v136
    %v427 = vunpack.c.l.b16 %v137
    %v428 = vunpack.c.h.b16 %v137
    %v429 = vunpack.c.l.b16 %v138
    %v430 = vunpack.c.h.b16 %v138
    %v431 = vunpack.c.l.b16 %v139
    %v432 = vunpack.c.h.b16 %v139
    %v433 = vunpack.c.l.b16 %v140
    %v434 = vunpack.c.h.b16 %v140
    %v435 = vunpack.c.l.b16 %v141
    %v436 = vunpack.c.h.b16 %v141
    %v437 = vunpack.c.l.b16 %v142
    %v438 = vunpack.c.h.b16 %v142
    %v439 = vunpack.c.l.b16 %v143
    %v440 = vunpack.c.h.b16 %v143
    %v441 = vunpack.c.l.b16 %v144
    %v442 = vunpack.c.h.b16 %v144
    %v443 = vunpack.c.l.b16 %v145
    %v444 = vunpack.c.h.b16 %v145
    %v445 = vunpack.c.l.b16 %v146
    %v446 = vunpack.c.h.b16 %v146
    %v447 = vpack.c.b16 %v253, %v251
    %v448 = vpack.c.b16 %v254, %v252
    %v449 = vpack.c.b16 %v257, %v255
    %v450 = vpack.c.b16 %v258, %v256
    %v451 = vpack.c.b16 %v261, %v259
    %v452 = vpack.c.b16 %v262, %v260
    %v453 = vpack.c.b16 %v265, %v263
    %v454 = vpack.c.b16 %v266, %v264
    %v455 = vpack.c.b16 %v269, %v267
    %v456 = vpack.c.b16 %v270, %v268
    %v457 = vpack.c.b16 %v273, %v271
    %v458 = vpack.c.b16 %v274, %v272
    %v459 = vpack.c.b16 %v277, %v275
    %v460 = vpack.c.b16 %v278, %v276
    %v461 = vpack.c.b16 %v281, %v279
    %v462 = vpack.c.b16 %v282, %v280
    %v463 = vpack.c.b16 %v285, %v283
    %v464 = vpack.c.b16 %v286, %v284
    %v465 = vpack.c.b16 %v289, %v287
    %v466 = vpack.c.b16 %v290, %v288
    %v467 = vpack.c.b16 %v293, %v291
    %v468 = vpack.c.b16 %v294, %v292
    %v469 = vpack.c.b16 %v297, %v295
    %v470 = vpack.c.b16 %v298, %v296
    %v471 = vpack.c.b16 %v301, %v299
    %v472 = vpack.c.b16 %v302, %v300
    %v473 = vpack.c.b16 %v305, %v303
    %v474 = vpack.c.b16 %v306, %v304
    %v475 = vpack.c.b16 %v309, %v307
    %v476 = vpack.c.b16 %v310, %v308
    %v477 = vpack.c.b16 %v313, %v311
    %v478 = vpack.c.b16 %v314, %v312
    %v479 = vpack.c.b16 %v317, %v315
    %v480 = vpack.c.b16 %v318, %v316
    %v481 = vpack.c.b16 %v321, %v319
    %v482 = vpack.c.b16 %v322, %v320
    %v483 = vpack.c.b16 %v325, %v323
    %v484 = vpack.c.b16 %v326, %v324
    %v485 = vpack.c.b16 %v329, %v327
    %v486 = vpack.c.b16 %v330, %v328
    %v487 = vpack.c.b16 %v333, %v331
    %v488 = vpack.c.b16 %v334, %v332
    %v489 = vpack.c.b16 %v337, %v335
    %v490 = vpack.c.b16 %v338, %v336
    %v491 = vpack.c.b16 %v341, %v339
    %v492 = vpack.c.b16 %v342, %v340
    %v493 = vpack.c.b16 %v345, %v343
    %v494 = vpack.c.b16 %v346, %v344
    %v495 = vpack.c.b16 %v349, %v347
    %v496 = vpack.c.b16 %v350, %v348
    %v497 = vpack.c.b16 %v353, %v351
    %v498 = vpack.c.b16 %v354, %v352
    %v499 = vpack.c.b16 %v357, %v355
    %v500 = vpack.c.b16 %v358, %v356
    %v501 = vpack.c.b16 %v361, %v359
    %v502 = vpack.c.b16 %v362, %v360
    %v503 = vpack.c.b16 %v365, %v363
    %v504 = vpack.c.b16 %v366, %v364
    %v505 = vpack.c.b16 %v369, %v367
    %v506 = vpack.c.b16 %v370, %v368
    %v507 = vpack.c.b16 %v373, %v371
    %v508 = vpack.c.b16 %v374, %v372
    %v509 = vpack.c.b16 %v377, %v375
    %v510 = vpack.c.b16 %v378, %v376
    %v511 = vpack.c.b16 %v381, %v379
    %v512 = vpack.c.b16 %v382, %v380
    %v513 = vpack.c.b16 %v385, %v383
    %v514 = vpack.c.b16 %v386, %v384
    %v515 = vpack.c.b16 %v389, %v387
    %v516 = vpack.c.b16 %v390, %v388
    %v517 = vpack.c.b16 %v393, %v391
    %v518 = vpack.c.b16 %v394, %v392
    %v519 = vpack.c.b16 %v397, %v395
    %v520 = vpack.c.b16 %v398, %v396
    %v521 = vpack.c.b16 %v401, %v399
    %v522 = vpack.c.b16 %v402, %v400
    %v523 = vpack.c.b16 %v405, %v403
    %v524 = vpack.c.b16 %v406, %v404
    %v525 = vpack.c.b16 %v409, %v407
    %v526 = vpack.c.b16 %v410, %v408
    %v527 = vpack.c.b16 %v413, %v411
    %v528 = vpack.c.b16 %v414, %v412
    %v529 = vpack.c.b16 %v417, %v415
    %v530 = vpack.c.b16 %v418, %v416
    %v531 = vpack.c.b16 %v421, %v419
    %v532 = vpack.c.b16 %v422, %v420
    %v533 = vpack.c.b16 %v425, %v423
    %v534 = vpack.c.b16 %v426, %v424
    %v535 = vpack.c.b16 %v429, %v427
    %v536 = vpack.c.b16 %v430, %v428
    %v537 = vpack.c.b16 %v433, %v431
    %v538 = vpack.c.b16 %v434, %v432
    %v539 = vpack.c.b16 %v437, %v435
    %v540 = vpack.c.b16 %v438, %v436
    %v541 = vpack.c.b16 %v441, %v439
    %v542 = vpack.c.b16 %v442, %v440
    %v543 = vpack.c.b16 %v445, %v443
    %v544 = vpack.c.b16 %v446, %v444
    %vm643 = vcmask 130048
    %v645 = vsel %vm643, %v48, 0
    %647 = vmatpush.bf16.msra.mxu0 %v461
    %648 = vmatpush.bf16.msra.mxu0 %v459
    %649 = vmatpush.bf16.msra.mxu0 %v457
    %650 = vmatpush.bf16.msra.mxu0 %v455
    %651 = vmatpush.bf16.msra.mxu0 %v453
    %652 = vmatpush.bf16.msra.mxu0 %v451
    %653 = vmatpush.bf16.msra.mxu0 %v449
    %654 = vmatpush.bf16.msra.mxu0 %v447
    %655 = vmatmul.bf16.gmra.mxu0 %v42
    %v656 = vpop.f32.mrf.mxu0
    %v657 = vadd.f32 %v149, %v656
    %v658 = vpop.f32.mrf.mxu0
    %v659 = vadd.f32 %v149, %v658
    %660 = vdwg.mxu0
    %661 = vmatpush.bf16.msra.mxu0 %v477
    %662 = vmatpush.bf16.msra.mxu0 %v475
    %663 = vmatpush.bf16.msra.mxu0 %v473
    %664 = vmatpush.bf16.msra.mxu0 %v471
    %665 = vmatpush.bf16.msra.mxu0 %v469
    %666 = vmatpush.bf16.msra.mxu0 %v467
    %667 = vmatpush.bf16.msra.mxu0 %v465
    %668 = vmatpush.bf16.msra.mxu0 %v463
    %669 = vmatmul.bf16.gmra.mxu0 %v43
    %v670 = vpop.f32.mrf.mxu0
    %v671 = vadd.f32 %v657, %v670
    %v672 = vpop.f32.mrf.mxu0
    %v673 = vadd.f32 %v659, %v672
    %674 = vdwg.mxu0
    %675 = vmatpush.bf16.msra.mxu0 %v493
    %676 = vmatpush.bf16.msra.mxu0 %v491
    %677 = vmatpush.bf16.msra.mxu0 %v489
    %678 = vmatpush.bf16.msra.mxu0 %v487
    %679 = vmatpush.bf16.msra.mxu0 %v485
    %680 = vmatpush.bf16.msra.mxu0 %v483
    %681 = vmatpush.bf16.msra.mxu0 %v481
    %682 = vmatpush.bf16.msra.mxu0 %v479
    %683 = vmatmul.bf16.gmra.mxu0 %v44
    %v684 = vpop.f32.mrf.mxu0
    %v685 = vadd.f32 %v671, %v684
    %v686 = vpop.f32.mrf.mxu0
    %v687 = vadd.f32 %v673, %v686
    %688 = vdwg.mxu0
    %689 = vmatpush.bf16.msra.mxu0 %v509
    %690 = vmatpush.bf16.msra.mxu0 %v507
    %691 = vmatpush.bf16.msra.mxu0 %v505
    %692 = vmatpush.bf16.msra.mxu0 %v503
    %693 = vmatpush.bf16.msra.mxu0 %v501
    %694 = vmatpush.bf16.msra.mxu0 %v499
    %695 = vmatpush.bf16.msra.mxu0 %v497
    %696 = vmatpush.bf16.msra.mxu0 %v495
    %697 = vmatmul.bf16.gmra.mxu0 %v45
    %v698 = vpop.f32.mrf.mxu0
    %v699 = vadd.f32 %v685, %v698
    %v700 = vpop.f32.mrf.mxu0
    %v701 = vadd.f32 %v687, %v700
    %702 = vdwg.mxu0
    %703 = vmatpush.bf16.msra.mxu0 %v525
    %704 = vmatpush.bf16.msra.mxu0 %v523
    %705 = vmatpush.bf16.msra.mxu0 %v521
    %706 = vmatpush.bf16.msra.mxu0 %v519
    %707 = vmatpush.bf16.msra.mxu0 %v517
    %708 = vmatpush.bf16.msra.mxu0 %v515
    %709 = vmatpush.bf16.msra.mxu0 %v513
    %710 = vmatpush.bf16.msra.mxu0 %v511
    %711 = vmatmul.bf16.gmra.mxu0 %v46
    %v712 = vpop.f32.mrf.mxu0
    %v713 = vadd.f32 %v699, %v712
    %v714 = vpop.f32.mrf.mxu0
    %v715 = vadd.f32 %v701, %v714
    %716 = vdwg.mxu0
    %717 = vmatpush.bf16.msra.mxu0 %v541
    %718 = vmatpush.bf16.msra.mxu0 %v539
    %719 = vmatpush.bf16.msra.mxu0 %v537
    %720 = vmatpush.bf16.msra.mxu0 %v535
    %721 = vmatpush.bf16.msra.mxu0 %v533
    %722 = vmatpush.bf16.msra.mxu0 %v531
    %723 = vmatpush.bf16.msra.mxu0 %v529
    %724 = vmatpush.bf16.msra.mxu0 %v527
    %725 = vmatmul.bf16.gmra.mxu0 %v47
    %v726 = vpop.f32.mrf.mxu0
    %v727 = vadd.f32 %v713, %v726
    %v728 = vpop.f32.mrf.mxu0
    %v729 = vadd.f32 %v715, %v728
    %730 = vdwg.mxu0
    %731 = vmatpush.bf16.msra.mxu0 0
    %732 = vmatpush.bf16.msra.mxu0 0
    %733 = vmatpush.bf16.msra.mxu0 0
    %734 = vmatpush.bf16.msra.mxu0 0
    %735 = vmatpush.bf16.msra.mxu0 0
    %736 = vmatpush.bf16.msra.mxu0 0
    %737 = vmatpush.bf16.msra.mxu0 0
    %738 = vmatpush.bf16.msra.mxu0 %v543
    %739 = vmatmul.bf16.gmra.mxu0 %v645
    %v740 = vpop.f32.mrf.mxu0
    %v741 = vadd.f32 %v727, %v740
    %v742 = vpop.f32.mrf.mxu0
    %v743 = vadd.f32 %v729, %v742
    %744 = vdwg.mxu0
    %745 = vmatpush.bf16.msra.mxu0 %v462
    %746 = vmatpush.bf16.msra.mxu0 %v460
    %747 = vmatpush.bf16.msra.mxu0 %v458
    %748 = vmatpush.bf16.msra.mxu0 %v456
    %749 = vmatpush.bf16.msra.mxu0 %v454
    %750 = vmatpush.bf16.msra.mxu0 %v452
    %751 = vmatpush.bf16.msra.mxu0 %v450
    %752 = vmatpush.bf16.msra.mxu0 %v448
    %753 = vmatmul.bf16.gmra.mxu0 %v42
    %v754 = vpop.f32.mrf.mxu0
    %v755 = vadd.f32 %v150, %v754
    %v756 = vpop.f32.mrf.mxu0
    %v757 = vadd.f32 %v150, %v756
    %758 = vdwg.mxu0
    %759 = vmatpush.bf16.msra.mxu0 %v478
    %760 = vmatpush.bf16.msra.mxu0 %v476
    %761 = vmatpush.bf16.msra.mxu0 %v474
    %762 = vmatpush.bf16.msra.mxu0 %v472
    %763 = vmatpush.bf16.msra.mxu0 %v470
    %764 = vmatpush.bf16.msra.mxu0 %v468
    %765 = vmatpush.bf16.msra.mxu0 %v466
    %766 = vmatpush.bf16.msra.mxu0 %v464
    %767 = vmatmul.bf16.gmra.mxu0 %v43
    %v768 = vpop.f32.mrf.mxu0
    %v769 = vadd.f32 %v755, %v768
    %v770 = vpop.f32.mrf.mxu0
    %v771 = vadd.f32 %v757, %v770
    %772 = vdwg.mxu0
    %773 = vmatpush.bf16.msra.mxu0 %v494
    %774 = vmatpush.bf16.msra.mxu0 %v492
    %775 = vmatpush.bf16.msra.mxu0 %v490
    %776 = vmatpush.bf16.msra.mxu0 %v488
    %777 = vmatpush.bf16.msra.mxu0 %v486
    %778 = vmatpush.bf16.msra.mxu0 %v484
    %779 = vmatpush.bf16.msra.mxu0 %v482
    %780 = vmatpush.bf16.msra.mxu0 %v480
    %781 = vmatmul.bf16.gmra.mxu0 %v44
    %v782 = vpop.f32.mrf.mxu0
    %v783 = vadd.f32 %v769, %v782
    %v784 = vpop.f32.mrf.mxu0
    %v785 = vadd.f32 %v771, %v784
    %786 = vdwg.mxu0
    %787 = vmatpush.bf16.msra.mxu0 %v510
    %788 = vmatpush.bf16.msra.mxu0 %v508
    %789 = vmatpush.bf16.msra.mxu0 %v506
    %790 = vmatpush.bf16.msra.mxu0 %v504
    %791 = vmatpush.bf16.msra.mxu0 %v502
    %792 = vmatpush.bf16.msra.mxu0 %v500
    %793 = vmatpush.bf16.msra.mxu0 %v498
    %794 = vmatpush.bf16.msra.mxu0 %v496
    %795 = vmatmul.bf16.gmra.mxu0 %v45
    %v796 = vpop.f32.mrf.mxu0
    %v797 = vadd.f32 %v783, %v796
    %v798 = vpop.f32.mrf.mxu0
    %v799 = vadd.f32 %v785, %v798
    %800 = vdwg.mxu0
    %801 = vmatpush.bf16.msra.mxu0 %v526
    %802 = vmatpush.bf16.msra.mxu0 %v524
    %803 = vmatpush.bf16.msra.mxu0 %v522
    %804 = vmatpush.bf16.msra.mxu0 %v520
    %805 = vmatpush.bf16.msra.mxu0 %v518
    %806 = vmatpush.bf16.msra.mxu0 %v516
    %807 = vmatpush.bf16.msra.mxu0 %v514
    %808 = vmatpush.bf16.msra.mxu0 %v512
    %809 = vmatmul.bf16.gmra.mxu0 %v46
    %v810 = vpop.f32.mrf.mxu0
    %v811 = vadd.f32 %v797, %v810
    %v812 = vpop.f32.mrf.mxu0
    %v813 = vadd.f32 %v799, %v812
    %814 = vdwg.mxu0
    %815 = vmatpush.bf16.msra.mxu0 %v542
    %816 = vmatpush.bf16.msra.mxu0 %v540
    %817 = vmatpush.bf16.msra.mxu0 %v538
    %818 = vmatpush.bf16.msra.mxu0 %v536
    %819 = vmatpush.bf16.msra.mxu0 %v534
    %820 = vmatpush.bf16.msra.mxu0 %v532
    %821 = vmatpush.bf16.msra.mxu0 %v530
    %822 = vmatpush.bf16.msra.mxu0 %v528
    %823 = vmatmul.bf16.gmra.mxu0 %v47
    %v824 = vpop.f32.mrf.mxu0
    %v825 = vadd.f32 %v811, %v824
    %v826 = vpop.f32.mrf.mxu0
    %v827 = vadd.f32 %v813, %v826
    %828 = vdwg.mxu0
    %829 = vmatpush.bf16.msra.mxu0 0
    %830 = vmatpush.bf16.msra.mxu0 0
    %831 = vmatpush.bf16.msra.mxu0 0
    %832 = vmatpush.bf16.msra.mxu0 0
    %833 = vmatpush.bf16.msra.mxu0 0
    %834 = vmatpush.bf16.msra.mxu0 0
    %835 = vmatpush.bf16.msra.mxu0 0
    %836 = vmatpush.bf16.msra.mxu0 %v544
    %837 = vmatmul.bf16.gmra.mxu0 %v645
    %v838 = vpop.f32.mrf.mxu0
    %v839 = vadd.f32 %v825, %v838
    %v840 = vpop.f32.mrf.mxu0
    %v841 = vadd.f32 %v827, %v840
    %842 = vdwg.mxu0
    %vm843 = vcmp.gt.f32.partialorder %v741, 0.0
    %vm844 = vcmp.gt.f32.partialorder %v839, 0.0
    %vm845 = vcmp.gt.f32.partialorder %v743, 0.0
    %vm846 = vcmp.gt.f32.partialorder %v841, 0.0
    %v847 = vmul.f32 %v741, 0.2
    %v848 = vmul.f32 %v839, 0.2
    %v849 = vmul.f32 %v743, 0.2
    %v850 = vmul.f32 %v841, 0.2
    %v851 = vsel %vm843, %v741, %v847
    %v852 = vsel %vm844, %v839, %v848
    %v853 = vsel %vm845, %v743, %v849
    %v854 = vsel %vm846, %v841, %v850
    %v855 = vpack.c.bf16 %v853, %v851
    %v856 = vpack.c.bf16 %v854, %v852
    %v857 = vld [vmem:[%s3] sm:$0xff]
    %v858 = vld [vmem:[%s3 + $0x8] sm:$0xff]
    %v859 = vld [vmem:[%s3 + $0x10] sm:$0xff]
    %v860 = vld [vmem:[%s3 + $0x18] sm:$0xff]
    %v861 = vld [vmem:[%s3 + $0x20] sm:$0xff]
    %v862 = vld [vmem:[%s3 + $0x28] sm:$0xff]
    %v863 = vld [vmem:[%s3 + $0x30] sm:$0xff]
    %v864 = vld [vmem:[%s3 + $0x38] sm:$0xff]
    %v865 = vld [vmem:[%s3 + $0x40] sm:$0xff]
    %v866 = vld [vmem:[%s3 + $0x48] sm:$0xff]
    %v867 = vld [vmem:[%s3 + $0x50] sm:$0xff]
    %v868 = vld [vmem:[%s3 + $0x58] sm:$0xff]
    %v869 = vld [vmem:[%s3 + $0x60] sm:$0xff]
    %v870 = vld [vmem:[%s3 + $0x68] sm:$0xff]
    %v871 = vld [vmem:[%s3 + $0x70] sm:$0xff]
    %v872 = vld [vmem:[%s3 + $0x78] sm:$0xff]
    %v873 = vld [vmem:[%s3 + $0x80] sm:$0xff]
    %v874 = vld [vmem:[%s3 + $0x88] sm:$0xff]
    %v875 = vld [vmem:[%s3 + $0x90] sm:$0xff]
    %v876 = vld [vmem:[%s3 + $0x98] sm:$0xff]
    %v877 = vld [vmem:[%s3 + $0xa0] sm:$0xff]
    %v878 = vld [vmem:[%s3 + $0xa8] sm:$0xff]
    %v879 = vld [vmem:[%s3 + $0xb0] sm:$0xff]
    %v880 = vld [vmem:[%s3 + $0xb8] sm:$0xff]
    %v881 = vld [vmem:[%s3 + $0xc0] sm:$0xff]
    %v882 = vld [vmem:[%s3 + $0xc8] sm:$0xff]
    %v883 = vld [vmem:[%s3 + $0xd0] sm:$0xff]
    %v884 = vld [vmem:[%s3 + $0xd8] sm:$0xff]
    %v885 = vld [vmem:[%s3 + $0xe0] sm:$0xff]
    %v886 = vld [vmem:[%s3 + $0xe8] sm:$0xff]
    %v887 = vld [vmem:[%s3 + $0xf0] sm:$0xff]
    %v888 = vld [vmem:[%s3 + $0xf8] sm:$0xff]
    %v889 = vld [vmem:[%s4] sm:$0x3]
    %v891 = vperm.slane %v889, 0
    %v892 = vperm.slane %v889, 1
    %v927 = vunpack.c.l.b16 %v857
    %v928 = vunpack.c.h.b16 %v857
    %v929 = vunpack.c.l.b16 %v858
    %v930 = vunpack.c.h.b16 %v858
    %v931 = vunpack.c.l.b16 %v859
    %v932 = vunpack.c.h.b16 %v859
    %v933 = vunpack.c.l.b16 %v860
    %v934 = vunpack.c.h.b16 %v860
    %v935 = vunpack.c.l.b16 %v861
    %v936 = vunpack.c.h.b16 %v861
    %v937 = vunpack.c.l.b16 %v862
    %v938 = vunpack.c.h.b16 %v862
    %v939 = vunpack.c.l.b16 %v863
    %v940 = vunpack.c.h.b16 %v863
    %v941 = vunpack.c.l.b16 %v864
    %v942 = vunpack.c.h.b16 %v864
    %v943 = vunpack.c.l.b16 %v865
    %v944 = vunpack.c.h.b16 %v865
    %v945 = vunpack.c.l.b16 %v866
    %v946 = vunpack.c.h.b16 %v866
    %v947 = vunpack.c.l.b16 %v867
    %v948 = vunpack.c.h.b16 %v867
    %v949 = vunpack.c.l.b16 %v868
    %v950 = vunpack.c.h.b16 %v868
    %v951 = vunpack.c.l.b16 %v869
    %v952 = vunpack.c.h.b16 %v869
    %v953 = vunpack.c.l.b16 %v870
    %v954 = vunpack.c.h.b16 %v870
    %v955 = vunpack.c.l.b16 %v871
    %v956 = vunpack.c.h.b16 %v871
    %v957 = vunpack.c.l.b16 %v872
    %v958 = vunpack.c.h.b16 %v872
    %v959 = vunpack.c.l.b16 %v873
    %v960 = vunpack.c.h.b16 %v873
    %v961 = vunpack.c.l.b16 %v874
    %v962 = vunpack.c.h.b16 %v874
    %v963 = vunpack.c.l.b16 %v875
    %v964 = vunpack.c.h.b16 %v875
    %v965 = vunpack.c.l.b16 %v876
    %v966 = vunpack.c.h.b16 %v876
    %v967 = vunpack.c.l.b16 %v877
    %v968 = vunpack.c.h.b16 %v877
    %v969 = vunpack.c.l.b16 %v878
    %v970 = vunpack.c.h.b16 %v878
    %v971 = vunpack.c.l.b16 %v879
    %v972 = vunpack.c.h.b16 %v879
    %v973 = vunpack.c.l.b16 %v880
    %v974 = vunpack.c.h.b16 %v880
    %v975 = vunpack.c.l.b16 %v881
    %v976 = vunpack.c.h.b16 %v881
    %v977 = vunpack.c.l.b16 %v882
    %v978 = vunpack.c.h.b16 %v882
    %v979 = vunpack.c.l.b16 %v883
    %v980 = vunpack.c.h.b16 %v883
    %v981 = vunpack.c.l.b16 %v884
    %v982 = vunpack.c.h.b16 %v884
    %v983 = vunpack.c.l.b16 %v885
    %v984 = vunpack.c.h.b16 %v885
    %v985 = vunpack.c.l.b16 %v886
    %v986 = vunpack.c.h.b16 %v886
    %v987 = vunpack.c.l.b16 %v887
    %v988 = vunpack.c.h.b16 %v887
    %v989 = vunpack.c.l.b16 %v888
    %v990 = vunpack.c.h.b16 %v888
    %v991 = vpack.c.b16 %v929, %v927
    %v992 = vpack.c.b16 %v930, %v928
    %v993 = vpack.c.b16 %v933, %v931
    %v994 = vpack.c.b16 %v934, %v932
    %v995 = vpack.c.b16 %v937, %v935
    %v996 = vpack.c.b16 %v938, %v936
    %v997 = vpack.c.b16 %v941, %v939
    %v998 = vpack.c.b16 %v942, %v940
    %v999 = vpack.c.b16 %v945, %v943
    %v1000 = vpack.c.b16 %v946, %v944
    %v1001 = vpack.c.b16 %v949, %v947
    %v1002 = vpack.c.b16 %v950, %v948
    %v1003 = vpack.c.b16 %v953, %v951
    %v1004 = vpack.c.b16 %v954, %v952
    %v1005 = vpack.c.b16 %v957, %v955
    %v1006 = vpack.c.b16 %v958, %v956
    %v1007 = vpack.c.b16 %v961, %v959
    %v1008 = vpack.c.b16 %v962, %v960
    %v1009 = vpack.c.b16 %v965, %v963
    %v1010 = vpack.c.b16 %v966, %v964
    %v1011 = vpack.c.b16 %v969, %v967
    %v1012 = vpack.c.b16 %v970, %v968
    %v1013 = vpack.c.b16 %v973, %v971
    %v1014 = vpack.c.b16 %v974, %v972
    %v1015 = vpack.c.b16 %v977, %v975
    %v1016 = vpack.c.b16 %v978, %v976
    %v1017 = vpack.c.b16 %v981, %v979
    %v1018 = vpack.c.b16 %v982, %v980
    %v1019 = vpack.c.b16 %v985, %v983
    %v1020 = vpack.c.b16 %v986, %v984
    %v1021 = vpack.c.b16 %v989, %v987
    %v1022 = vpack.c.b16 %v990, %v988
    %1055 = vmatpush.bf16.msra.mxu0 %v1005
    %1056 = vmatpush.bf16.msra.mxu0 %v1003
    %1057 = vmatpush.bf16.msra.mxu0 %v1001
    %1058 = vmatpush.bf16.msra.mxu0 %v999
    %1059 = vmatpush.bf16.msra.mxu0 %v997
    %1060 = vmatpush.bf16.msra.mxu0 %v995
    %1061 = vmatpush.bf16.msra.mxu0 %v993
    %1062 = vmatpush.bf16.msra.mxu0 %v991
    %1063 = vmatmul.bf16.gmra.mxu0 %v855
    %v1064 = vpop.f32.mrf.mxu0
    %v1065 = vadd.f32 %v891, %v1064
    %v1066 = vpop.f32.mrf.mxu0
    %v1067 = vadd.f32 %v891, %v1066
    %1068 = vdwg.mxu0
    %1069 = vmatpush.bf16.msra.mxu0 %v1021
    %1070 = vmatpush.bf16.msra.mxu0 %v1019
    %1071 = vmatpush.bf16.msra.mxu0 %v1017
    %1072 = vmatpush.bf16.msra.mxu0 %v1015
    %1073 = vmatpush.bf16.msra.mxu0 %v1013
    %1074 = vmatpush.bf16.msra.mxu0 %v1011
    %1075 = vmatpush.bf16.msra.mxu0 %v1009
    %1076 = vmatpush.bf16.msra.mxu0 %v1007
    %1077 = vmatmul.bf16.gmra.mxu0 %v856
    %v1078 = vpop.f32.mrf.mxu0
    %v1079 = vadd.f32 %v1065, %v1078
    %v1080 = vpop.f32.mrf.mxu0
    %v1081 = vadd.f32 %v1067, %v1080
    %1082 = vdwg.mxu0
    %1083 = vmatpush.bf16.msra.mxu0 %v1006
    %1084 = vmatpush.bf16.msra.mxu0 %v1004
    %1085 = vmatpush.bf16.msra.mxu0 %v1002
    %1086 = vmatpush.bf16.msra.mxu0 %v1000
    %1087 = vmatpush.bf16.msra.mxu0 %v998
    %1088 = vmatpush.bf16.msra.mxu0 %v996
    %1089 = vmatpush.bf16.msra.mxu0 %v994
    %1090 = vmatpush.bf16.msra.mxu0 %v992
    %1091 = vmatmul.bf16.gmra.mxu0 %v855
    %v1092 = vpop.f32.mrf.mxu0
    %v1093 = vadd.f32 %v892, %v1092
    %v1094 = vpop.f32.mrf.mxu0
    %v1095 = vadd.f32 %v892, %v1094
    %1096 = vdwg.mxu0
    %1097 = vmatpush.bf16.msra.mxu0 %v1022
    %1098 = vmatpush.bf16.msra.mxu0 %v1020
    %1099 = vmatpush.bf16.msra.mxu0 %v1018
    %1100 = vmatpush.bf16.msra.mxu0 %v1016
    %1101 = vmatpush.bf16.msra.mxu0 %v1014
    %1102 = vmatpush.bf16.msra.mxu0 %v1012
    %1103 = vmatpush.bf16.msra.mxu0 %v1010
    %1104 = vmatpush.bf16.msra.mxu0 %v1008
    %1105 = vmatmul.bf16.gmra.mxu0 %v856
    %v1106 = vpop.f32.mrf.mxu0
    %v1107 = vadd.f32 %v1093, %v1106
    %v1108 = vpop.f32.mrf.mxu0
    %v1109 = vadd.f32 %v1095, %v1108
    %1110 = vdwg.mxu0
    %vm1111 = vcmp.gt.f32.partialorder %v1079, 0.0
    %vm1112 = vcmp.gt.f32.partialorder %v1107, 0.0
    %vm1113 = vcmp.gt.f32.partialorder %v1081, 0.0
    %vm1114 = vcmp.gt.f32.partialorder %v1109, 0.0
    %v1115 = vmul.f32 %v1079, 0.2
    %v1116 = vmul.f32 %v1107, 0.2
    %v1117 = vmul.f32 %v1081, 0.2
    %v1118 = vmul.f32 %v1109, 0.2
    %v1119 = vsel %vm1111, %v1079, %v1115
    %v1120 = vsel %vm1112, %v1107, %v1116
    %v1121 = vsel %vm1113, %v1081, %v1117
    %v1122 = vsel %vm1114, %v1109, %v1118
    %v1123 = vpack.c.bf16 %v1121, %v1119
    %v1124 = vpack.c.bf16 %v1122, %v1120
    %v1125 = vld [vmem:[%s5] sm:$0xff]
    %v1126 = vld [vmem:[%s5 + $0x8] sm:$0xff]
    %v1127 = vld [vmem:[%s5 + $0x10] sm:$0xff]
    %v1128 = vld [vmem:[%s5 + $0x18] sm:$0xf]
    %v1129 = vld [vmem:[%s5 + $0x1c] sm:$0xff]
    %v1130 = vld [vmem:[%s5 + $0x24] sm:$0xff]
    %v1131 = vld [vmem:[%s5 + $0x2c] sm:$0xff]
    %v1132 = vld [vmem:[%s5 + $0x34] sm:$0xf]
    %v1133 = vld [vmem:[%s5 + $0x38] sm:$0xff]
    %v1134 = vld [vmem:[%s5 + $0x40] sm:$0xff]
    %v1135 = vld [vmem:[%s5 + $0x48] sm:$0xff]
    %v1136 = vld [vmem:[%s5 + $0x50] sm:$0xf]
    %v1137 = vld [vmem:[%s5 + $0x54] sm:$0xff]
    %v1138 = vld [vmem:[%s5 + $0x5c] sm:$0xff]
    %v1139 = vld [vmem:[%s5 + $0x64] sm:$0xff]
    %v1140 = vld [vmem:[%s5 + $0x6c] sm:$0xf]
    %v1141 = vld [vmem:[%s5 + $0x70] sm:$0xff]
    %v1142 = vld [vmem:[%s5 + $0x78] sm:$0xff]
    %v1143 = vld [vmem:[%s5 + $0x80] sm:$0xff]
    %v1144 = vld [vmem:[%s5 + $0x88] sm:$0xf]
    %v1145 = vld [vmem:[%s5 + $0x8c] sm:$0xff]
    %v1146 = vld [vmem:[%s5 + $0x94] sm:$0xff]
    %v1147 = vld [vmem:[%s5 + $0x9c] sm:$0xff]
    %v1148 = vld [vmem:[%s5 + $0xa4] sm:$0xf]
    %v1149 = vld [vmem:[%s5 + $0xa8] sm:$0xff]
    %v1150 = vld [vmem:[%s5 + $0xb0] sm:$0xff]
    %v1151 = vld [vmem:[%s5 + $0xb8] sm:$0xff]
    %v1152 = vld [vmem:[%s5 + $0xc0] sm:$0xf]
    %v1153 = vld [vmem:[%s5 + $0xc4] sm:$0xff]
    %v1154 = vld [vmem:[%s5 + $0xcc] sm:$0xff]
    %v1155 = vld [vmem:[%s5 + $0xd4] sm:$0xff]
    %v1156 = vld [vmem:[%s5 + $0xdc] sm:$0xf]
    %v1157 = vld [vmem:[%s5 + $0xe0] sm:$0xff]
    %v1158 = vld [vmem:[%s5 + $0xe8] sm:$0xff]
    %v1159 = vld [vmem:[%s5 + $0xf0] sm:$0xff]
    %v1160 = vld [vmem:[%s5 + $0xf8] sm:$0xf]
    %v1161 = vld [vmem:[%s5 + $0xfc] sm:$0xff]
    %v1162 = vld [vmem:[%s5 + $0x104] sm:$0xff]
    %v1163 = vld [vmem:[%s5 + $0x10c] sm:$0xff]
    %v1164 = vld [vmem:[%s5 + $0x114] sm:$0xf]
    %v1165 = vld [vmem:[%s5 + $0x118] sm:$0xff]
    %v1166 = vld [vmem:[%s5 + $0x120] sm:$0xff]
    %v1167 = vld [vmem:[%s5 + $0x128] sm:$0xff]
    %v1168 = vld [vmem:[%s5 + $0x130] sm:$0xf]
    %v1169 = vld [vmem:[%s5 + $0x134] sm:$0xff]
    %v1170 = vld [vmem:[%s5 + $0x13c] sm:$0xff]
    %v1171 = vld [vmem:[%s5 + $0x144] sm:$0xff]
    %v1172 = vld [vmem:[%s5 + $0x14c] sm:$0xf]
    %v1173 = vld [vmem:[%s5 + $0x150] sm:$0xff]
    %v1174 = vld [vmem:[%s5 + $0x158] sm:$0xff]
    %v1175 = vld [vmem:[%s5 + $0x160] sm:$0xff]
    %v1176 = vld [vmem:[%s5 + $0x168] sm:$0xf]
    %v1177 = vld [vmem:[%s5 + $0x16c] sm:$0xff]
    %v1178 = vld [vmem:[%s5 + $0x174] sm:$0xff]
    %v1179 = vld [vmem:[%s5 + $0x17c] sm:$0xff]
    %v1180 = vld [vmem:[%s5 + $0x184] sm:$0xf]
    %v1181 = vld [vmem:[%s5 + $0x188] sm:$0xff]
    %v1182 = vld [vmem:[%s5 + $0x190] sm:$0xff]
    %v1183 = vld [vmem:[%s5 + $0x198] sm:$0xff]
    %v1184 = vld [vmem:[%s5 + $0x1a0] sm:$0xf]
    %v1185 = vld [vmem:[%s5 + $0x1a4] sm:$0xff]
    %v1186 = vld [vmem:[%s5 + $0x1ac] sm:$0xff]
    %v1187 = vld [vmem:[%s5 + $0x1b4] sm:$0xff]
    %v1188 = vld [vmem:[%s5 + $0x1bc] sm:$0xf]
    %v1189 = vld [vmem:[%s5 + $0x1c0] sm:$0xff]
    %v1190 = vld [vmem:[%s5 + $0x1c8] sm:$0xff]
    %v1191 = vld [vmem:[%s5 + $0x1d0] sm:$0xff]
    %v1192 = vld [vmem:[%s5 + $0x1d8] sm:$0xf]
    %v1193 = vld [vmem:[%s5 + $0x1dc] sm:$0xff]
    %v1194 = vld [vmem:[%s5 + $0x1e4] sm:$0xff]
    %v1195 = vld [vmem:[%s5 + $0x1ec] sm:$0xff]
    %v1196 = vld [vmem:[%s5 + $0x1f4] sm:$0xf]
    %v1197 = vld [vmem:[%s5 + $0x1f8] sm:$0xff]
    %v1198 = vld [vmem:[%s5 + $0x200] sm:$0xff]
    %v1199 = vld [vmem:[%s5 + $0x208] sm:$0xff]
    %v1200 = vld [vmem:[%s5 + $0x210] sm:$0xf]
    %v1201 = vld [vmem:[%s5 + $0x214] sm:$0xff]
    %v1202 = vld [vmem:[%s5 + $0x21c] sm:$0xff]
    %v1203 = vld [vmem:[%s5 + $0x224] sm:$0xff]
    %v1204 = vld [vmem:[%s5 + $0x22c] sm:$0xf]
    %v1205 = vld [vmem:[%s5 + $0x230] sm:$0xff]
    %v1206 = vld [vmem:[%s5 + $0x238] sm:$0xff]
    %v1207 = vld [vmem:[%s5 + $0x240] sm:$0xff]
    %v1208 = vld [vmem:[%s5 + $0x248] sm:$0xf]
    %v1209 = vld [vmem:[%s5 + $0x24c] sm:$0xff]
    %v1210 = vld [vmem:[%s5 + $0x254] sm:$0xff]
    %v1211 = vld [vmem:[%s5 + $0x25c] sm:$0xff]
    %v1212 = vld [vmem:[%s5 + $0x264] sm:$0xf]
    %v1213 = vld [vmem:[%s5 + $0x268] sm:$0xff]
    %v1214 = vld [vmem:[%s5 + $0x270] sm:$0xff]
    %v1215 = vld [vmem:[%s5 + $0x278] sm:$0xff]
    %v1216 = vld [vmem:[%s5 + $0x280] sm:$0xf]
    %v1217 = vld [vmem:[%s5 + $0x284] sm:$0xff]
    %v1218 = vld [vmem:[%s5 + $0x28c] sm:$0xff]
    %v1219 = vld [vmem:[%s5 + $0x294] sm:$0xff]
    %v1220 = vld [vmem:[%s5 + $0x29c] sm:$0xf]
    %v1221 = vld [vmem:[%s5 + $0x2a0] sm:$0xff]
    %v1222 = vld [vmem:[%s5 + $0x2a8] sm:$0xff]
    %v1223 = vld [vmem:[%s5 + $0x2b0] sm:$0xff]
    %v1224 = vld [vmem:[%s5 + $0x2b8] sm:$0xf]
    %v1225 = vld [vmem:[%s5 + $0x2bc] sm:$0xff]
    %v1226 = vld [vmem:[%s5 + $0x2c4] sm:$0xff]
    %v1227 = vld [vmem:[%s5 + $0x2cc] sm:$0xff]
    %v1228 = vld [vmem:[%s5 + $0x2d4] sm:$0xf]
    %v1229 = vld [vmem:[%s5 + $0x2d8] sm:$0xff]
    %v1230 = vld [vmem:[%s5 + $0x2e0] sm:$0xff]
    %v1231 = vld [vmem:[%s5 + $0x2e8] sm:$0xff]
    %v1232 = vld [vmem:[%s5 + $0x2f0] sm:$0xf]
    %v1233 = vld [vmem:[%s5 + $0x2f4] sm:$0xff]
    %v1234 = vld [vmem:[%s5 + $0x2fc] sm:$0xff]
    %v1235 = vld [vmem:[%s5 + $0x304] sm:$0xff]
    %v1236 = vld [vmem:[%s5 + $0x30c] sm:$0xf]
    %v1237 = vld [vmem:[%s5 + $0x310] sm:$0xff]
    %v1238 = vld [vmem:[%s5 + $0x318] sm:$0xff]
    %v1239 = vld [vmem:[%s5 + $0x320] sm:$0xff]
    %v1240 = vld [vmem:[%s5 + $0x328] sm:$0xf]
    %v1241 = vld [vmem:[%s5 + $0x32c] sm:$0xff]
    %v1242 = vld [vmem:[%s5 + $0x334] sm:$0xff]
    %v1243 = vld [vmem:[%s5 + $0x33c] sm:$0xff]
    %v1244 = vld [vmem:[%s5 + $0x344] sm:$0xf]
    %v1245 = vld [vmem:[%s5 + $0x348] sm:$0xff]
    %v1246 = vld [vmem:[%s5 + $0x350] sm:$0xff]
    %v1247 = vld [vmem:[%s5 + $0x358] sm:$0xff]
    %v1248 = vld [vmem:[%s5 + $0x360] sm:$0xf]
    %v1249 = vld [vmem:[%s5 + $0x364] sm:$0xff]
    %v1250 = vld [vmem:[%s5 + $0x36c] sm:$0xff]
    %v1251 = vld [vmem:[%s5 + $0x374] sm:$0xff]
    %v1252 = vld [vmem:[%s5 + $0x37c] sm:$0xf]
    %v1253 = vld [vmem:[%s6] sm:$0x7f]
    %v1255 = vperm.slane %v1253, 0
    %v1256 = vperm.slane %v1253, 1
    %v1257 = vperm.slane %v1253, 2
    %v1258 = vperm.slane %v1253, 3
    %v1259 = vperm.slane %v1253, 4
    %v1260 = vperm.slane %v1253, 5
    %v1261 = vperm.slane %v1253, 6
    %v1397 = vunpack.c.l.b16 %v1125
    %v1398 = vunpack.c.h.b16 %v1125
    %v1399 = vunpack.c.l.b16 %v1126
    %v1400 = vunpack.c.h.b16 %v1126
    %v1401 = vunpack.c.l.b16 %v1127
    %v1402 = vunpack.c.h.b16 %v1127
    %v1403 = vunpack.c.l.b16 %v1128
    %v1404 = vunpack.c.l.b16 %v1129
    %v1405 = vunpack.c.h.b16 %v1129
    %v1406 = vunpack.c.l.b16 %v1130
    %v1407 = vunpack.c.h.b16 %v1130
    %v1408 = vunpack.c.l.b16 %v1131
    %v1409 = vunpack.c.h.b16 %v1131
    %v1410 = vunpack.c.l.b16 %v1132
    %v1411 = vunpack.c.l.b16 %v1133
    %v1412 = vunpack.c.h.b16 %v1133
    %v1413 = vunpack.c.l.b16 %v1134
    %v1414 = vunpack.c.h.b16 %v1134
    %v1415 = vunpack.c.l.b16 %v1135
    %v1416 = vunpack.c.h.b16 %v1135
    %v1417 = vunpack.c.l.b16 %v1136
    %v1418 = vunpack.c.l.b16 %v1137
    %v1419 = vunpack.c.h.b16 %v1137
    %v1420 = vunpack.c.l.b16 %v1138
    %v1421 = vunpack.c.h.b16 %v1138
    %v1422 = vunpack.c.l.b16 %v1139
    %v1423 = vunpack.c.h.b16 %v1139
    %v1424 = vunpack.c.l.b16 %v1140
    %v1425 = vunpack.c.l.b16 %v1141
    %v1426 = vunpack.c.h.b16 %v1141
    %v1427 = vunpack.c.l.b16 %v1142
    %v1428 = vunpack.c.h.b16 %v1142
    %v1429 = vunpack.c.l.b16 %v1143
    %v1430 = vunpack.c.h.b16 %v1143
    %v1431 = vunpack.c.l.b16 %v1144
    %v1432 = vunpack.c.l.b16 %v1145
    %v1433 = vunpack.c.h.b16 %v1145
    %v1434 = vunpack.c.l.b16 %v1146
    %v1435 = vunpack.c.h.b16 %v1146
    %v1436 = vunpack.c.l.b16 %v1147
    %v1437 = vunpack.c.h.b16 %v1147
    %v1438 = vunpack.c.l.b16 %v1148
    %v1439 = vunpack.c.l.b16 %v1149
    %v1440 = vunpack.c.h.b16 %v1149
    %v1441 = vunpack.c.l.b16 %v1150
    %v1442 = vunpack.c.h.b16 %v1150
    %v1443 = vunpack.c.l.b16 %v1151
    %v1444 = vunpack.c.h.b16 %v1151
    %v1445 = vunpack.c.l.b16 %v1152
    %v1446 = vunpack.c.l.b16 %v1153
    %v1447 = vunpack.c.h.b16 %v1153
    %v1448 = vunpack.c.l.b16 %v1154
    %v1449 = vunpack.c.h.b16 %v1154
    %v1450 = vunpack.c.l.b16 %v1155
    %v1451 = vunpack.c.h.b16 %v1155
    %v1452 = vunpack.c.l.b16 %v1156
    %v1453 = vunpack.c.l.b16 %v1157
    %v1454 = vunpack.c.h.b16 %v1157
    %v1455 = vunpack.c.l.b16 %v1158
    %v1456 = vunpack.c.h.b16 %v1158
    %v1457 = vunpack.c.l.b16 %v1159
    %v1458 = vunpack.c.h.b16 %v1159
    %v1459 = vunpack.c.l.b16 %v1160
    %v1460 = vunpack.c.l.b16 %v1161
    %v1461 = vunpack.c.h.b16 %v1161
    %v1462 = vunpack.c.l.b16 %v1162
    %v1463 = vunpack.c.h.b16 %v1162
    %v1464 = vunpack.c.l.b16 %v1163
    %v1465 = vunpack.c.h.b16 %v1163
    %v1466 = vunpack.c.l.b16 %v1164
    %v1467 = vunpack.c.l.b16 %v1165
    %v1468 = vunpack.c.h.b16 %v1165
    %v1469 = vunpack.c.l.b16 %v1166
    %v1470 = vunpack.c.h.b16 %v1166
    %v1471 = vunpack.c.l.b16 %v1167
    %v1472 = vunpack.c.h.b16 %v1167
    %v1473 = vunpack.c.l.b16 %v1168
    %v1474 = vunpack.c.l.b16 %v1169
    %v1475 = vunpack.c.h.b16 %v1169
    %v1476 = vunpack.c.l.b16 %v1170
    %v1477 = vunpack.c.h.b16 %v1170
    %v1478 = vunpack.c.l.b16 %v1171
    %v1479 = vunpack.c.h.b16 %v1171
    %v1480 = vunpack.c.l.b16 %v1172
    %v1481 = vunpack.c.l.b16 %v1173
    %v1482 = vunpack.c.h.b16 %v1173
    %v1483 = vunpack.c.l.b16 %v1174
    %v1484 = vunpack.c.h.b16 %v1174
    %v1485 = vunpack.c.l.b16 %v1175
    %v1486 = vunpack.c.h.b16 %v1175
    %v1487 = vunpack.c.l.b16 %v1176
    %v1488 = vunpack.c.l.b16 %v1177
    %v1489 = vunpack.c.h.b16 %v1177
    %v1490 = vunpack.c.l.b16 %v1178
    %v1491 = vunpack.c.h.b16 %v1178
    %v1492 = vunpack.c.l.b16 %v1179
    %v1493 = vunpack.c.h.b16 %v1179
    %v1494 = vunpack.c.l.b16 %v1180
    %v1495 = vunpack.c.l.b16 %v1181
    %v1496 = vunpack.c.h.b16 %v1181
    %v1497 = vunpack.c.l.b16 %v1182
    %v1498 = vunpack.c.h.b16 %v1182
    %v1499 = vunpack.c.l.b16 %v1183
    %v1500 = vunpack.c.h.b16 %v1183
    %v1501 = vunpack.c.l.b16 %v1184
    %v1502 = vunpack.c.l.b16 %v1185
    %v1503 = vunpack.c.h.b16 %v1185
    %v1504 = vunpack.c.l.b16 %v1186
    %v1505 = vunpack.c.h.b16 %v1186
    %v1506 = vunpack.c.l.b16 %v1187
    %v1507 = vunpack.c.h.b16 %v1187
    %v1508 = vunpack.c.l.b16 %v1188
    %v1509 = vunpack.c.l.b16 %v1189
    %v1510 = vunpack.c.h.b16 %v1189
    %v1511 = vunpack.c.l.b16 %v1190
    %v1512 = vunpack.c.h.b16 %v1190
    %v1513 = vunpack.c.l.b16 %v1191
    %v1514 = vunpack.c.h.b16 %v1191
    %v1515 = vunpack.c.l.b16 %v1192
    %v1516 = vunpack.c.l.b16 %v1193
    %v1517 = vunpack.c.h.b16 %v1193
    %v1518 = vunpack.c.l.b16 %v1194
    %v1519 = vunpack.c.h.b16 %v1194
    %v1520 = vunpack.c.l.b16 %v1195
    %v1521 = vunpack.c.h.b16 %v1195
    %v1522 = vunpack.c.l.b16 %v1196
    %v1523 = vunpack.c.l.b16 %v1197
    %v1524 = vunpack.c.h.b16 %v1197
    %v1525 = vunpack.c.l.b16 %v1198
    %v1526 = vunpack.c.h.b16 %v1198
    %v1527 = vunpack.c.l.b16 %v1199
    %v1528 = vunpack.c.h.b16 %v1199
    %v1529 = vunpack.c.l.b16 %v1200
    %v1530 = vunpack.c.l.b16 %v1201
    %v1531 = vunpack.c.h.b16 %v1201
    %v1532 = vunpack.c.l.b16 %v1202
    %v1533 = vunpack.c.h.b16 %v1202
    %v1534 = vunpack.c.l.b16 %v1203
    %v1535 = vunpack.c.h.b16 %v1203
    %v1536 = vunpack.c.l.b16 %v1204
    %v1537 = vunpack.c.l.b16 %v1205
    %v1538 = vunpack.c.h.b16 %v1205
    %v1539 = vunpack.c.l.b16 %v1206
    %v1540 = vunpack.c.h.b16 %v1206
    %v1541 = vunpack.c.l.b16 %v1207
    %v1542 = vunpack.c.h.b16 %v1207
    %v1543 = vunpack.c.l.b16 %v1208
    %v1544 = vunpack.c.l.b16 %v1209
    %v1545 = vunpack.c.h.b16 %v1209
    %v1546 = vunpack.c.l.b16 %v1210
    %v1547 = vunpack.c.h.b16 %v1210
    %v1548 = vunpack.c.l.b16 %v1211
    %v1549 = vunpack.c.h.b16 %v1211
    %v1550 = vunpack.c.l.b16 %v1212
    %v1551 = vunpack.c.l.b16 %v1213
    %v1552 = vunpack.c.h.b16 %v1213
    %v1553 = vunpack.c.l.b16 %v1214
    %v1554 = vunpack.c.h.b16 %v1214
    %v1555 = vunpack.c.l.b16 %v1215
    %v1556 = vunpack.c.h.b16 %v1215
    %v1557 = vunpack.c.l.b16 %v1216
    %v1558 = vunpack.c.l.b16 %v1217
    %v1559 = vunpack.c.h.b16 %v1217
    %v1560 = vunpack.c.l.b16 %v1218
    %v1561 = vunpack.c.h.b16 %v1218
    %v1562 = vunpack.c.l.b16 %v1219
    %v1563 = vunpack.c.h.b16 %v1219
    %v1564 = vunpack.c.l.b16 %v1220
    %v1565 = vunpack.c.l.b16 %v1221
    %v1566 = vunpack.c.h.b16 %v1221
    %v1567 = vunpack.c.l.b16 %v1222
    %v1568 = vunpack.c.h.b16 %v1222
    %v1569 = vunpack.c.l.b16 %v1223
    %v1570 = vunpack.c.h.b16 %v1223
    %v1571 = vunpack.c.l.b16 %v1224
    %v1572 = vunpack.c.l.b16 %v1225
    %v1573 = vunpack.c.h.b16 %v1225
    %v1574 = vunpack.c.l.b16 %v1226
    %v1575 = vunpack.c.h.b16 %v1226
    %v1576 = vunpack.c.l.b16 %v1227
    %v1577 = vunpack.c.h.b16 %v1227
    %v1578 = vunpack.c.l.b16 %v1228
    %v1579 = vunpack.c.l.b16 %v1229
    %v1580 = vunpack.c.h.b16 %v1229
    %v1581 = vunpack.c.l.b16 %v1230
    %v1582 = vunpack.c.h.b16 %v1230
    %v1583 = vunpack.c.l.b16 %v1231
    %v1584 = vunpack.c.h.b16 %v1231
    %v1585 = vunpack.c.l.b16 %v1232
    %v1586 = vunpack.c.l.b16 %v1233
    %v1587 = vunpack.c.h.b16 %v1233
    %v1588 = vunpack.c.l.b16 %v1234
    %v1589 = vunpack.c.h.b16 %v1234
    %v1590 = vunpack.c.l.b16 %v1235
    %v1591 = vunpack.c.h.b16 %v1235
    %v1592 = vunpack.c.l.b16 %v1236
    %v1593 = vunpack.c.l.b16 %v1237
    %v1594 = vunpack.c.h.b16 %v1237
    %v1595 = vunpack.c.l.b16 %v1238
    %v1596 = vunpack.c.h.b16 %v1238
    %v1597 = vunpack.c.l.b16 %v1239
    %v1598 = vunpack.c.h.b16 %v1239
    %v1599 = vunpack.c.l.b16 %v1240
    %v1600 = vunpack.c.l.b16 %v1241
    %v1601 = vunpack.c.h.b16 %v1241
    %v1602 = vunpack.c.l.b16 %v1242
    %v1603 = vunpack.c.h.b16 %v1242
    %v1604 = vunpack.c.l.b16 %v1243
    %v1605 = vunpack.c.h.b16 %v1243
    %v1606 = vunpack.c.l.b16 %v1244
    %v1607 = vunpack.c.l.b16 %v1245
    %v1608 = vunpack.c.h.b16 %v1245
    %v1609 = vunpack.c.l.b16 %v1246
    %v1610 = vunpack.c.h.b16 %v1246
    %v1611 = vunpack.c.l.b16 %v1247
    %v1612 = vunpack.c.h.b16 %v1247
    %v1613 = vunpack.c.l.b16 %v1248
    %v1614 = vunpack.c.l.b16 %v1249
    %v1615 = vunpack.c.h.b16 %v1249
    %v1616 = vunpack.c.l.b16 %v1250
    %v1617 = vunpack.c.h.b16 %v1250
    %v1618 = vunpack.c.l.b16 %v1251
    %v1619 = vunpack.c.h.b16 %v1251
    %v1620 = vunpack.c.l.b16 %v1252
    %v1621 = vpack.c.b16 %v1404, %v1397
    %v1622 = vpack.c.b16 %v1405, %v1398
    %v1623 = vpack.c.b16 %v1406, %v1399
    %v1624 = vpack.c.b16 %v1407, %v1400
    %v1625 = vpack.c.b16 %v1408, %v1401
    %v1626 = vpack.c.b16 %v1409, %v1402
    %v1627 = vpack.c.b16 %v1410, %v1403
    %v1628 = vpack.c.b16 %v1418, %v1411
    %v1629 = vpack.c.b16 %v1419, %v1412
    %v1630 = vpack.c.b16 %v1420, %v1413
    %v1631 = vpack.c.b16 %v1421, %v1414
    %v1632 = vpack.c.b16 %v1422, %v1415
    %v1633 = vpack.c.b16 %v1423, %v1416
    %v1634 = vpack.c.b16 %v1424, %v1417
    %v1635 = vpack.c.b16 %v1432, %v1425
    %v1636 = vpack.c.b16 %v1433, %v1426
    %v1637 = vpack.c.b16 %v1434, %v1427
    %v1638 = vpack.c.b16 %v1435, %v1428
    %v1639 = vpack.c.b16 %v1436, %v1429
    %v1640 = vpack.c.b16 %v1437, %v1430
    %v1641 = vpack.c.b16 %v1438, %v1431
    %v1642 = vpack.c.b16 %v1446, %v1439
    %v1643 = vpack.c.b16 %v1447, %v1440
    %v1644 = vpack.c.b16 %v1448, %v1441
    %v1645 = vpack.c.b16 %v1449, %v1442
    %v1646 = vpack.c.b16 %v1450, %v1443
    %v1647 = vpack.c.b16 %v1451, %v1444
    %v1648 = vpack.c.b16 %v1452, %v1445
    %v1649 = vpack.c.b16 %v1460, %v1453
    %v1650 = vpack.c.b16 %v1461, %v1454
    %v1651 = vpack.c.b16 %v1462, %v1455
    %v1652 = vpack.c.b16 %v1463, %v1456
    %v1653 = vpack.c.b16 %v1464, %v1457
    %v1654 = vpack.c.b16 %v1465, %v1458
    %v1655 = vpack.c.b16 %v1466, %v1459
    %v1656 = vpack.c.b16 %v1474, %v1467
    %v1657 = vpack.c.b16 %v1475, %v1468
    %v1658 = vpack.c.b16 %v1476, %v1469
    %v1659 = vpack.c.b16 %v1477, %v1470
    %v1660 = vpack.c.b16 %v1478, %v1471
    %v1661 = vpack.c.b16 %v1479, %v1472
    %v1662 = vpack.c.b16 %v1480, %v1473
    %v1663 = vpack.c.b16 %v1488, %v1481
    %v1664 = vpack.c.b16 %v1489, %v1482
    %v1665 = vpack.c.b16 %v1490, %v1483
    %v1666 = vpack.c.b16 %v1491, %v1484
    %v1667 = vpack.c.b16 %v1492, %v1485
    %v1668 = vpack.c.b16 %v1493, %v1486
    %v1669 = vpack.c.b16 %v1494, %v1487
    %v1670 = vpack.c.b16 %v1502, %v1495
    %v1671 = vpack.c.b16 %v1503, %v1496
    %v1672 = vpack.c.b16 %v1504, %v1497
    %v1673 = vpack.c.b16 %v1505, %v1498
    %v1674 = vpack.c.b16 %v1506, %v1499
    %v1675 = vpack.c.b16 %v1507, %v1500
    %v1676 = vpack.c.b16 %v1508, %v1501
    %v1677 = vpack.c.b16 %v1516, %v1509
    %v1678 = vpack.c.b16 %v1517, %v1510
    %v1679 = vpack.c.b16 %v1518, %v1511
    %v1680 = vpack.c.b16 %v1519, %v1512
    %v1681 = vpack.c.b16 %v1520, %v1513
    %v1682 = vpack.c.b16 %v1521, %v1514
    %v1683 = vpack.c.b16 %v1522, %v1515
    %v1684 = vpack.c.b16 %v1530, %v1523
    %v1685 = vpack.c.b16 %v1531, %v1524
    %v1686 = vpack.c.b16 %v1532, %v1525
    %v1687 = vpack.c.b16 %v1533, %v1526
    %v1688 = vpack.c.b16 %v1534, %v1527
    %v1689 = vpack.c.b16 %v1535, %v1528
    %v1690 = vpack.c.b16 %v1536, %v1529
    %v1691 = vpack.c.b16 %v1544, %v1537
    %v1692 = vpack.c.b16 %v1545, %v1538
    %v1693 = vpack.c.b16 %v1546, %v1539
    %v1694 = vpack.c.b16 %v1547, %v1540
    %v1695 = vpack.c.b16 %v1548, %v1541
    %v1696 = vpack.c.b16 %v1549, %v1542
    %v1697 = vpack.c.b16 %v1550, %v1543
    %v1698 = vpack.c.b16 %v1558, %v1551
    %v1699 = vpack.c.b16 %v1559, %v1552
    %v1700 = vpack.c.b16 %v1560, %v1553
    %v1701 = vpack.c.b16 %v1561, %v1554
    %v1702 = vpack.c.b16 %v1562, %v1555
    %v1703 = vpack.c.b16 %v1563, %v1556
    %v1704 = vpack.c.b16 %v1564, %v1557
    %v1705 = vpack.c.b16 %v1572, %v1565
    %v1706 = vpack.c.b16 %v1573, %v1566
    %v1707 = vpack.c.b16 %v1574, %v1567
    %v1708 = vpack.c.b16 %v1575, %v1568
    %v1709 = vpack.c.b16 %v1576, %v1569
    %v1710 = vpack.c.b16 %v1577, %v1570
    %v1711 = vpack.c.b16 %v1578, %v1571
    %v1712 = vpack.c.b16 %v1586, %v1579
    %v1713 = vpack.c.b16 %v1587, %v1580
    %v1714 = vpack.c.b16 %v1588, %v1581
    %v1715 = vpack.c.b16 %v1589, %v1582
    %v1716 = vpack.c.b16 %v1590, %v1583
    %v1717 = vpack.c.b16 %v1591, %v1584
    %v1718 = vpack.c.b16 %v1592, %v1585
    %v1719 = vpack.c.b16 %v1600, %v1593
    %v1720 = vpack.c.b16 %v1601, %v1594
    %v1721 = vpack.c.b16 %v1602, %v1595
    %v1722 = vpack.c.b16 %v1603, %v1596
    %v1723 = vpack.c.b16 %v1604, %v1597
    %v1724 = vpack.c.b16 %v1605, %v1598
    %v1725 = vpack.c.b16 %v1606, %v1599
    %v1726 = vpack.c.b16 %v1614, %v1607
    %v1727 = vpack.c.b16 %v1615, %v1608
    %v1728 = vpack.c.b16 %v1616, %v1609
    %v1729 = vpack.c.b16 %v1617, %v1610
    %v1730 = vpack.c.b16 %v1618, %v1611
    %v1731 = vpack.c.b16 %v1619, %v1612
    %v1732 = vpack.c.b16 %v1620, %v1613
    %1845 = vmatpush.bf16.msra.mxu0 %v1670
    %1846 = vmatpush.bf16.msra.mxu0 %v1663
    %1847 = vmatpush.bf16.msra.mxu0 %v1656
    %1848 = vmatpush.bf16.msra.mxu0 %v1649
    %1849 = vmatpush.bf16.msra.mxu0 %v1642
    %1850 = vmatpush.bf16.msra.mxu0 %v1635
    %1851 = vmatpush.bf16.msra.mxu0 %v1628
    %1852 = vmatpush.bf16.msra.mxu0 %v1621
    %1853 = vmatmul.bf16.gmra.mxu0 %v1123
    %v1854 = vpop.f32.mrf.mxu0
    %v1855 = vadd.f32 %v1255, %v1854
    %v1856 = vpop.f32.mrf.mxu0
    %v1857 = vadd.f32 %v1255, %v1856
    %1858 = vdwg.mxu0
    %1859 = vmatpush.bf16.msra.mxu0 %v1726
    %1860 = vmatpush.bf16.msra.mxu0 %v1719
    %1861 = vmatpush.bf16.msra.mxu0 %v1712
    %1862 = vmatpush.bf16.msra.mxu0 %v1705
    %1863 = vmatpush.bf16.msra.mxu0 %v1698
    %1864 = vmatpush.bf16.msra.mxu0 %v1691
    %1865 = vmatpush.bf16.msra.mxu0 %v1684
    %1866 = vmatpush.bf16.msra.mxu0 %v1677
    %1867 = vmatmul.bf16.gmra.mxu0 %v1124
    %v1868 = vpop.f32.mrf.mxu0
    %v1869 = vadd.f32 %v1855, %v1868
    %v1870 = vpop.f32.mrf.mxu0
    %v1871 = vadd.f32 %v1857, %v1870
    %1872 = vdwg.mxu0
    %1873 = vmatpush.bf16.msra.mxu0 %v1671
    %1874 = vmatpush.bf16.msra.mxu0 %v1664
    %1875 = vmatpush.bf16.msra.mxu0 %v1657
    %1876 = vmatpush.bf16.msra.mxu0 %v1650
    %1877 = vmatpush.bf16.msra.mxu0 %v1643
    %1878 = vmatpush.bf16.msra.mxu0 %v1636
    %1879 = vmatpush.bf16.msra.mxu0 %v1629
    %1880 = vmatpush.bf16.msra.mxu0 %v1622
    %1881 = vmatmul.bf16.gmra.mxu0 %v1123
    %v1882 = vpop.f32.mrf.mxu0
    %v1883 = vadd.f32 %v1256, %v1882
    %v1884 = vpop.f32.mrf.mxu0
    %v1885 = vadd.f32 %v1256, %v1884
    %1886 = vdwg.mxu0
    %1887 = vmatpush.bf16.msra.mxu0 %v1727
    %1888 = vmatpush.bf16.msra.mxu0 %v1720
    %1889 = vmatpush.bf16.msra.mxu0 %v1713
    %1890 = vmatpush.bf16.msra.mxu0 %v1706
    %1891 = vmatpush.bf16.msra.mxu0 %v1699
    %1892 = vmatpush.bf16.msra.mxu0 %v1692
    %1893 = vmatpush.bf16.msra.mxu0 %v1685
    %1894 = vmatpush.bf16.msra.mxu0 %v1678
    %1895 = vmatmul.bf16.gmra.mxu0 %v1124
    %v1896 = vpop.f32.mrf.mxu0
    %v1897 = vadd.f32 %v1883, %v1896
    %v1898 = vpop.f32.mrf.mxu0
    %v1899 = vadd.f32 %v1885, %v1898
    %1900 = vdwg.mxu0
    %1901 = vmatpush.bf16.msra.mxu0 %v1672
    %1902 = vmatpush.bf16.msra.mxu0 %v1665
    %1903 = vmatpush.bf16.msra.mxu0 %v1658
    %1904 = vmatpush.bf16.msra.mxu0 %v1651
    %1905 = vmatpush.bf16.msra.mxu0 %v1644
    %1906 = vmatpush.bf16.msra.mxu0 %v1637
    %1907 = vmatpush.bf16.msra.mxu0 %v1630
    %1908 = vmatpush.bf16.msra.mxu0 %v1623
    %1909 = vmatmul.bf16.gmra.mxu0 %v1123
    %v1910 = vpop.f32.mrf.mxu0
    %v1911 = vadd.f32 %v1257, %v1910
    %v1912 = vpop.f32.mrf.mxu0
    %v1913 = vadd.f32 %v1257, %v1912
    %1914 = vdwg.mxu0
    %1915 = vmatpush.bf16.msra.mxu0 %v1728
    %1916 = vmatpush.bf16.msra.mxu0 %v1721
    %1917 = vmatpush.bf16.msra.mxu0 %v1714
    %1918 = vmatpush.bf16.msra.mxu0 %v1707
    %1919 = vmatpush.bf16.msra.mxu0 %v1700
    %1920 = vmatpush.bf16.msra.mxu0 %v1693
    %1921 = vmatpush.bf16.msra.mxu0 %v1686
    %1922 = vmatpush.bf16.msra.mxu0 %v1679
    %1923 = vmatmul.bf16.gmra.mxu0 %v1124
    %v1924 = vpop.f32.mrf.mxu0
    %v1925 = vadd.f32 %v1911, %v1924
    %v1926 = vpop.f32.mrf.mxu0
    %v1927 = vadd.f32 %v1913, %v1926
    %1928 = vdwg.mxu0
    %1929 = vmatpush.bf16.msra.mxu0 %v1673
    %1930 = vmatpush.bf16.msra.mxu0 %v1666
    %1931 = vmatpush.bf16.msra.mxu0 %v1659
    %1932 = vmatpush.bf16.msra.mxu0 %v1652
    %1933 = vmatpush.bf16.msra.mxu0 %v1645
    %1934 = vmatpush.bf16.msra.mxu0 %v1638
    %1935 = vmatpush.bf16.msra.mxu0 %v1631
    %1936 = vmatpush.bf16.msra.mxu0 %v1624
    %1937 = vmatmul.bf16.gmra.mxu0 %v1123
    %v1938 = vpop.f32.mrf.mxu0
    %v1939 = vadd.f32 %v1258, %v1938
    %v1940 = vpop.f32.mrf.mxu0
    %v1941 = vadd.f32 %v1258, %v1940
    %1942 = vdwg.mxu0
    %1943 = vmatpush.bf16.msra.mxu0 %v1729
    %1944 = vmatpush.bf16.msra.mxu0 %v1722
    %1945 = vmatpush.bf16.msra.mxu0 %v1715
    %1946 = vmatpush.bf16.msra.mxu0 %v1708
    %1947 = vmatpush.bf16.msra.mxu0 %v1701
    %1948 = vmatpush.bf16.msra.mxu0 %v1694
    %1949 = vmatpush.bf16.msra.mxu0 %v1687
    %1950 = vmatpush.bf16.msra.mxu0 %v1680
    %1951 = vmatmul.bf16.gmra.mxu0 %v1124
    %v1952 = vpop.f32.mrf.mxu0
    %v1953 = vadd.f32 %v1939, %v1952
    %v1954 = vpop.f32.mrf.mxu0
    %v1955 = vadd.f32 %v1941, %v1954
    %1956 = vdwg.mxu0
    %1957 = vmatpush.bf16.msra.mxu0 %v1674
    %1958 = vmatpush.bf16.msra.mxu0 %v1667
    %1959 = vmatpush.bf16.msra.mxu0 %v1660
    %1960 = vmatpush.bf16.msra.mxu0 %v1653
    %1961 = vmatpush.bf16.msra.mxu0 %v1646
    %1962 = vmatpush.bf16.msra.mxu0 %v1639
    %1963 = vmatpush.bf16.msra.mxu0 %v1632
    %1964 = vmatpush.bf16.msra.mxu0 %v1625
    %1965 = vmatmul.bf16.gmra.mxu0 %v1123
    %v1966 = vpop.f32.mrf.mxu0
    %v1967 = vadd.f32 %v1259, %v1966
    %v1968 = vpop.f32.mrf.mxu0
    %v1969 = vadd.f32 %v1259, %v1968
    %1970 = vdwg.mxu0
    %1971 = vmatpush.bf16.msra.mxu0 %v1730
    %1972 = vmatpush.bf16.msra.mxu0 %v1723
    %1973 = vmatpush.bf16.msra.mxu0 %v1716
    %1974 = vmatpush.bf16.msra.mxu0 %v1709
    %1975 = vmatpush.bf16.msra.mxu0 %v1702
    %1976 = vmatpush.bf16.msra.mxu0 %v1695
    %1977 = vmatpush.bf16.msra.mxu0 %v1688
    %1978 = vmatpush.bf16.msra.mxu0 %v1681
    %1979 = vmatmul.bf16.gmra.mxu0 %v1124
    %v1980 = vpop.f32.mrf.mxu0
    %v1981 = vadd.f32 %v1967, %v1980
    %v1982 = vpop.f32.mrf.mxu0
    %v1983 = vadd.f32 %v1969, %v1982
    %1984 = vdwg.mxu0
    %1985 = vmatpush.bf16.msra.mxu0 %v1675
    %1986 = vmatpush.bf16.msra.mxu0 %v1668
    %1987 = vmatpush.bf16.msra.mxu0 %v1661
    %1988 = vmatpush.bf16.msra.mxu0 %v1654
    %1989 = vmatpush.bf16.msra.mxu0 %v1647
    %1990 = vmatpush.bf16.msra.mxu0 %v1640
    %1991 = vmatpush.bf16.msra.mxu0 %v1633
    %1992 = vmatpush.bf16.msra.mxu0 %v1626
    %1993 = vmatmul.bf16.gmra.mxu0 %v1123
    %v1994 = vpop.f32.mrf.mxu0
    %v1995 = vadd.f32 %v1260, %v1994
    %v1996 = vpop.f32.mrf.mxu0
    %v1997 = vadd.f32 %v1260, %v1996
    %1998 = vdwg.mxu0
    %1999 = vmatpush.bf16.msra.mxu0 %v1731
    %2000 = vmatpush.bf16.msra.mxu0 %v1724
    %2001 = vmatpush.bf16.msra.mxu0 %v1717
    %2002 = vmatpush.bf16.msra.mxu0 %v1710
    %2003 = vmatpush.bf16.msra.mxu0 %v1703
    %2004 = vmatpush.bf16.msra.mxu0 %v1696
    %2005 = vmatpush.bf16.msra.mxu0 %v1689
    %2006 = vmatpush.bf16.msra.mxu0 %v1682
    %2007 = vmatmul.bf16.gmra.mxu0 %v1124
    %v2008 = vpop.f32.mrf.mxu0
    %v2009 = vadd.f32 %v1995, %v2008
    %v2010 = vpop.f32.mrf.mxu0
    %v2011 = vadd.f32 %v1997, %v2010
    %2012 = vdwg.mxu0
    %2013 = vmatpush.bf16.msra.mxu0 %v1676
    %2014 = vmatpush.bf16.msra.mxu0 %v1669
    %2015 = vmatpush.bf16.msra.mxu0 %v1662
    %2016 = vmatpush.bf16.msra.mxu0 %v1655
    %2017 = vmatpush.bf16.msra.mxu0 %v1648
    %2018 = vmatpush.bf16.msra.mxu0 %v1641
    %2019 = vmatpush.bf16.msra.mxu0 %v1634
    %2020 = vmatpush.bf16.msra.mxu0 %v1627
    %2021 = vmatmul.bf16.gmra.mxu0 %v1123
    %v2022 = vpop.f32.mrf.mxu0
    %v2023 = vadd.f32 %v1261, %v2022
    %v2024 = vpop.f32.mrf.mxu0
    %v2025 = vadd.f32 %v1261, %v2024
    %2026 = vdwg.mxu0
    %2027 = vmatpush.bf16.msra.mxu0 %v1732
    %2028 = vmatpush.bf16.msra.mxu0 %v1725
    %2029 = vmatpush.bf16.msra.mxu0 %v1718
    %2030 = vmatpush.bf16.msra.mxu0 %v1711
    %2031 = vmatpush.bf16.msra.mxu0 %v1704
    %2032 = vmatpush.bf16.msra.mxu0 %v1697
    %2033 = vmatpush.bf16.msra.mxu0 %v1690
    %2034 = vmatpush.bf16.msra.mxu0 %v1683
    %2035 = vmatmul.bf16.gmra.mxu0 %v1124
    %v2036 = vpop.f32.mrf.mxu0
    %v2037 = vadd.f32 %v2023, %v2036
    %v2038 = vpop.f32.mrf.mxu0
    %v2039 = vadd.f32 %v2025, %v2038
    %2040 = vdwg.mxu0
    %v2041 = vpack.c.bf16 %v1897, %v1869
    %v2042 = vpack.c.bf16 %v1953, %v1925
    %v2043 = vpack.c.bf16 %v2009, %v1981
    %v2044 = vpack.c.bf16 %v2037, %v2037
    %v2045 = vpack.c.bf16 %v1899, %v1871
    %v2046 = vpack.c.bf16 %v1955, %v1927
    %v2047 = vpack.c.bf16 %v2011, %v1983
    %v2048 = vpack.c.bf16 %v2039, %v2039
    %2049 = vst [vmem:[#allocation2] sm:$0xff] %v2041
    %2050 = vst [vmem:[#allocation2 + $0x8] sm:$0xff] %v2042
    %2051 = vst [vmem:[#allocation2 + $0x10] sm:$0xff] %v2043
    %vm2052 = vcmask 125952
    %2053 = vst.msk [vmem:[#allocation2 + $0x18] sm:$0xf] %vm2052, %v2044
    %2054 = vst [vmem:[#allocation2 + $0x1c] sm:$0xff] %v2045
    %2055 = vst [vmem:[#allocation2 + $0x24] sm:$0xff] %v2046
    %2056 = vst [vmem:[#allocation2 + $0x2c] sm:$0xff] %v2047
    %2057 = vst.msk [vmem:[#allocation2 + $0x34] sm:$0xf] %vm2052, %v2048
    // Predicated region
    $region30: #{tpu_custom_call.1} parent=1 // pred_check
      _
    $region31: #{tpu_custom_call.1} parent=1 // pred_check_branch
      %2059 = sbr.rel (0) target = $region33
    $region32: #{tpu_custom_call.1} parent=1 // pred_region
      %2061 = vsyncadd [#allocation3], 0
      %s2062 = sshll.u32 [#allocation2], 4
      %s2063 = int_to_ptr.vmem [resolvable:$true] %s2062
      %s2064 = sshll.u32 %s7, 4
      %s2065 = int_to_ptr.hbm [resolvable:$true] %s2064
      %2070 = dma.vmem_to_hbm [thread:$0]  %s2063, 896, %s2065, [#allocation3], 448, 448, 28
    $region33: #{tpu_custom_call.1} parent=1 // pred_fallthru
      _
    // Predicated region
    $region34: #{tpu_custom_call.1} parent=1 // pred_check
      _
    $region35: #{tpu_custom_call.1} parent=1 // pred_check_branch
      %2072 = sbr.rel (0) target = $region37
    $region36: #{tpu_custom_call.1} parent=1 // pred_region
      %2074 = dma.done [#allocation3], 896
    $region37: #{tpu_custom_call.1} parent=1 // pred_fallthru
      _
    %2075 = vsyncpa [#allocation3], 1

</llo_original>
